<compile_context>
chip_gen: v5e
topology: v5e:2x2
jax: 0.10.0
libtpu: 0.0.40
codegen_flags: <defaults>
</compile_context>

<pallas_src>
import functools

import jax
import jax.numpy as jnp
from jax.experimental import pallas as pl
from jax.experimental.pallas import tpu as pltpu

INPUT_SIZE = 8
HIDDEN = 64
NUM_CLASSES = 5
OUT_PAD = 128          # lane-dense output width; real logits live in [:, :NUM_CLASSES]


def rnn_kernel(x_ref, wih0_ref, whh0_ref, b0_ref, w1_ref, b1_ref,
               wout_ref, bout_ref, out_ref, gx0_ref, *, batch, seq_len):
    B, T, H = batch, seq_len, HIDDEN

    # --- Hoisted layer-0 input projection (one well-shaped bf16 matmul),
    #     bias folded in, parked in VMEM scratch to keep vreg pressure low.
    gx0_ref[...] = (jnp.dot(x_ref[...], wih0_ref[...],
                            preferred_element_type=jnp.float32)
                    + b0_ref[...])

    # Loop-invariant weights (bf16: whh0 ~8 vregs, w1 ~16 vregs) and hoisted
    # bias broadcast (JAX does not CSE broadcast_in_dim inside unrolled loops).
    whh0 = whh0_ref[...]                                  # (H, 4H)  bf16
    w1 = w1_ref[...]                                      # (2H, 4H) bf16
    b1 = jnp.broadcast_to(b1_ref[...], (B, 4 * H))        # (B, 4H)  f32

    def gate_math(gates, c):
        i = jax.nn.sigmoid(gates[:, 0 * H:1 * H])
        f = jax.nn.sigmoid(gates[:, 1 * H:2 * H])
        g = jnp.tanh(gates[:, 2 * H:3 * H])
        o = jax.nn.sigmoid(gates[:, 3 * H:4 * H])
        c_new = f * c + i * g
        h_new = o * jnp.tanh(c_new)
        return h_new, c_new

    def cell0(t, h, c):
        # input-projection term precomputed; only the recurrent matmul remains
        gates = (gx0_ref[t * B:(t + 1) * B, :]
                 + jnp.dot(h.astype(jnp.bfloat16), whh0,
                           preferred_element_type=jnp.float32))
        return gate_math(gates, c)

    def cell1(h0_in, h, c):
        # fused ih/hh matmul: (B, 2H) @ (2H, 4H), K = 128
        xh = jnp.concatenate([h0_in, h], axis=-1).astype(jnp.bfloat16)
        gates = jnp.dot(xh, w1, preferred_element_type=jnp.float32) + b1
        return gate_math(gates, c)

    zeros = jnp.zeros((B, H), jnp.float32)

    # Skewed two-layer pipeline: prime with layer-0 step 0, then each
    # iteration computes layer-0 step t and layer-1 step t-1 (independent
    # matmuls -> they overlap on the MXU), drain layer-1's last step.
    h0, c0 = cell0(0, zeros, zeros)
    h1, c1 = zeros, zeros
    for t in range(1, T):
        h0n, c0n = cell0(t, h0, c0)
        h1, c1 = cell1(h0, h1, c1)
        h0, c0 = h0n, c0n
    h1, c1 = cell1(h0, h1, c1)

    # out = Linear(h1_last); lane-dense (B, 128) store, sliced in the wrapper.
    out_ref[...] = (jnp.dot(h1.astype(jnp.bfloat16), wout_ref[...],
                            preferred_element_type=jnp.float32)
                    + bout_ref[...])


def rnn_forward(x, kparams):
    B, T, _ = x.shape
    b_pad = max(8, ((B + 7) // 8) * 8)

    # Time-major, batch-padded, flattened to (T*B_pad, IN), bf16 matmul operand.
    x_tm = jnp.transpose(x, (1, 0, 2))
    x_tm = jnp.pad(x_tm, ((0, 0), (0, b_pad - B), (0, 0)))
    x_tm = x_tm.reshape(T * b_pad, INPUT_SIZE).astype(jnp.bfloat16)

    kernel = functools.partial(rnn_kernel, batch=b_pad, seq_len=T)
    vmem = pl.BlockSpec(memory_space=pltpu.MemorySpace.VMEM)
    out = pl.pallas_call(
        kernel,
        out_shape=jax.ShapeDtypeStruct((b_pad, OUT_PAD), jnp.float32),
        in_specs=[vmem] * 8,
        out_specs=vmem,
        scratch_shapes=[pltpu.VMEM((T * b_pad, 4 * HIDDEN), jnp.float32)],
    )(x_tm, *kparams)
    return out[:B, :NUM_CLASSES]


def init_params(key):
    """PyTorch-layout params, U(-1/sqrt(H), 1/sqrt(H)) like nn.LSTM / nn.Linear."""
    bound = 1.0 / (HIDDEN ** 0.5)
    keys = jax.random.split(key, 10)

    def u(k, shape):
        return jax.random.uniform(k, shape, jnp.float32, -bound, bound)

    wih0 = u(keys[0], (4 * HIDDEN, INPUT_SIZE))
    whh0 = u(keys[1], (4 * HIDDEN, HIDDEN))
    bih0 = u(keys[2], (4 * HIDDEN,))
    bhh0 = u(keys[3], (4 * HIDDEN,))
    wih1 = u(keys[4], (4 * HIDDEN, HIDDEN))
    whh1 = u(keys[5], (4 * HIDDEN, HIDDEN))
    bih1 = u(keys[6], (4 * HIDDEN,))
    bhh1 = u(keys[7], (4 * HIDDEN,))
    wout = u(keys[8], (NUM_CLASSES, HIDDEN))
    bout = u(keys[9], (NUM_CLASSES,))
    return (wih0, whh0, bih0, bhh0, wih1, whh1, bih1, bhh1, wout, bout)


def prepare_params(tp):
    """Kernel layout: transposed bf16 weights, fused biases, fused layer-1
    weight, zero-padded lane-dense output projection."""
    wih0, whh0, bih0, bhh0, wih1, whh1, bih1, bhh1, wout, bout = tp
    bf = jnp.bfloat16
    wih0_t = wih0.T.astype(bf)                                   # (IN, 4H)
    whh0_t = whh0.T.astype(bf)                                   # (H, 4H)
    b0 = (bih0 + bhh0).reshape(1, -1).astype(jnp.float32)        # (1, 4H)
    w1 = jnp.concatenate([wih1.T, whh1.T], axis=0).astype(bf)    # (2H, 4H)
    b1 = (bih1 + bhh1).reshape(1, -1).astype(jnp.float32)        # (1, 4H)
    wout_pad = jnp.zeros((HIDDEN, OUT_PAD), jnp.float32)
    wout_pad = wout_pad.at[:, :NUM_CLASSES].set(wout.T).astype(bf)
    bout_pad = jnp.zeros((1, OUT_PAD), jnp.float32)
    bout_pad = bout_pad.at[0, :NUM_CLASSES].set(bout)
    return (wih0_t, whh0_t, b0, w1, b1, wout_pad, bout_pad)


def rnn_reference(x, tp):
    """Pure-JAX reference with plain per-step two-matmul LSTM cells (structurally
    different from the kernel) using bf16 matmul operands to mirror precision."""
    wih0, whh0, bih0, bhh0, wih1, whh1, bih1, bhh1, wout, bout = tp
    H = HIDDEN
    bf = jnp.bfloat16

    def cell(x_t, h, c, wih, whh, bih, bhh):
        gates = (jnp.dot(x_t.astype(bf), wih.T.astype(bf),
                         preferred_element_type=jnp.float32)
                 + jnp.dot(h.astype(bf), whh.T.astype(bf),
                           preferred_element_type=jnp.float32)
                 + bih + bhh)
        i = jax.nn.sigmoid(gates[:, 0 * H:1 * H])
        f = jax.nn.sigmoid(gates[:, 1 * H:2 * H])
        g = jnp.tanh(gates[:, 2 * H:3 * H])
        o = jax.nn.sigmoid(gates[:, 3 * H:4 * H])
        c_new = f * c + i * g
        return o * jnp.tanh(c_new), c_new

    B, T, _ = x.shape
    h0 = c0 = h1 = c1 = jnp.zeros((B, H), jnp.float32)
    for t in range(T):
        h0, c0 = cell(x[:, t, :], h0, c0, wih0, whh0, bih0, bhh0)
        h1, c1 = cell(h0, h1, c1, wih1, whh1, bih1, bhh1)
    return (jnp.dot(h1.astype(bf), wout.T.astype(bf),
                    preferred_element_type=jnp.float32) + bout)


if __name__ == "__main__":
    key = jax.random.PRNGKey(0)
    kx, kp = jax.random.split(key)

    B, T = 2, 8  # batch=2, seq_len=8, feature dim = INPUT_SIZE = 8
    x = jax.random.normal(kx, (B, T, INPUT_SIZE), jnp.float32)
    tparams = init_params(kp)
    kparams = prepare_params(tparams)

    fwd = jax.jit(rnn_forward)
    out = jax.block_until_ready(fwd(x, kparams))
    assert out.shape == (B, NUM_CLASSES)

    ref = rnn_reference(x, tparams)
    assert jnp.allclose(out, ref, rtol=2e-2, atol=2e-2), (out, ref)

    print("KERNEL_OK")
</pallas_src>

<mosaic_0001>
module attributes {stable_mosaic.version = 11 : i64} {
  func.func @rnn_kernel(%arg0: memref<64x8xbf16, #tpu.memory_space<vmem>>, %arg1: memref<8x256xbf16, #tpu.memory_space<vmem>>, %arg2: memref<64x256xbf16, #tpu.memory_space<vmem>>, %arg3: memref<1x256xf32, #tpu.memory_space<vmem>>, %arg4: memref<128x256xbf16, #tpu.memory_space<vmem>>, %arg5: memref<1x256xf32, #tpu.memory_space<vmem>>, %arg6: memref<64x128xbf16, #tpu.memory_space<vmem>>, %arg7: memref<1x128xf32, #tpu.memory_space<vmem>>, %arg8: memref<8x128xf32, #tpu.memory_space<vmem>>, %arg9: memref<64x256xf32, #tpu.memory_space<vmem>>) attributes {dimension_semantics = [], scalar_prefetch = 0 : i64, scratch_operands = 1 : i64, tpu.core_type = #tpu.core_type<tc>} {
    %c0 = arith.constant 0 : index
    %c0_0 = arith.constant 0 : index
    %0 = vector.load %arg0[%c0, %c0_0] : memref<64x8xbf16, #tpu.memory_space<vmem>>, vector<64x8xbf16>
    %c0_1 = arith.constant 0 : index
    %c0_2 = arith.constant 0 : index
    %1 = vector.load %arg1[%c0_1, %c0_2] : memref<8x256xbf16, #tpu.memory_space<vmem>>, vector<8x256xbf16>
    %cst = arith.constant dense<0.000000e+00> : vector<64x256xf32>
    %2 = tpu.matmul %0, %1, %cst {dimension_numbers = #tpu.dot_dimension_numbers<[1], [0], [0], [1], [0, 0, 1, 1], [], []>} : vector<64x8xbf16>, vector<8x256xbf16>, vector<64x256xf32> -> vector<64x256xf32>
    %c0_3 = arith.constant 0 : index
    %c0_4 = arith.constant 0 : index
    %3 = vector.load %arg3[%c0_3, %c0_4] : memref<1x256xf32, #tpu.memory_space<vmem>>, vector<1x256xf32>
    %4 = vector.broadcast %3 : vector<1x256xf32> to vector<64x256xf32>
    %5 = arith.addf %2, %4 : vector<64x256xf32>
    %c0_5 = arith.constant 0 : index
    %c0_6 = arith.constant 0 : index
    %6 = vector.load %arg9[%c0_5, %c0_6] : memref<64x256xf32, #tpu.memory_space<vmem>>, vector<64x256xf32>
    tpu.vector_store %arg9[%c0_5, %c0_6], %5 {strides = array<i32>} : memref<64x256xf32, #tpu.memory_space<vmem>>, vector<64x256xf32>,
    %c0_7 = arith.constant 0 : index
    %c0_8 = arith.constant 0 : index
    %7 = vector.load %arg2[%c0_7, %c0_8] : memref<64x256xbf16, #tpu.memory_space<vmem>>, vector<64x256xbf16>
    %c0_9 = arith.constant 0 : index
    %c0_10 = arith.constant 0 : index
    %8 = vector.load %arg4[%c0_9, %c0_10] : memref<128x256xbf16, #tpu.memory_space<vmem>>, vector<128x256xbf16>
    %c0_11 = arith.constant 0 : index
    %c0_12 = arith.constant 0 : index
    %9 = vector.load %arg5[%c0_11, %c0_12] : memref<1x256xf32, #tpu.memory_space<vmem>>, vector<1x256xf32>
    %10 = vector.shape_cast %9 : vector<1x256xf32> to vector<1x256xf32>
    %11 = vector.broadcast %10 : vector<1x256xf32> to vector<8x256xf32>
    %cst_13 = arith.constant 0.000000e+00 : f32
    %12 = vector.broadcast %cst_13 : f32 to vector<8x64xf32>
    %c0_14 = arith.constant 0 : index
    %c0_15 = arith.constant 0 : index
    %13 = vector.load %arg9[%c0_14, %c0_15] : memref<64x256xf32, #tpu.memory_space<vmem>>, vector<8x256xf32>
    %14 = arith.truncf %12 : vector<8x64xf32> to vector<8x64xbf16>
    %cst_16 = arith.constant dense<0.000000e+00> : vector<8x256xf32>
    %15 = tpu.matmul %14, %7, %cst_16 {dimension_numbers = #tpu.dot_dimension_numbers<[1], [0], [0], [1], [0, 0, 1, 1], [], []>} : vector<8x64xbf16>, vector<64x256xbf16>, vector<8x256xf32> -> vector<8x256xf32>
    %16 = arith.addf %13, %15 : vector<8x256xf32>
    %17 = vector.extract_strided_slice %16 {offsets = [0, 0], sizes = [8, 64], strides = [1, 1]} : vector<8x256xf32> to vector<8x64xf32>
    %18 = arith.negf %17 : vector<8x64xf32>
    %19 = math.exp %18 : vector<8x64xf32>
    %cst_17 = arith.constant 1.000000e+00 : f32
    %20 = vector.broadcast %cst_17 : f32 to vector<8x64xf32>
    %21 = arith.addf %20, %19 : vector<8x64xf32>
    %22 = arith.divf %20, %21 : vector<8x64xf32>
    %23 = vector.extract_strided_slice %16 {offsets = [0, 64], sizes = [8, 64], strides = [1, 1]} : vector<8x256xf32> to vector<8x64xf32>
    %24 = arith.negf %23 : vector<8x64xf32>
    %25 = math.exp %24 : vector<8x64xf32>
    %cst_18 = arith.constant 1.000000e+00 : f32
    %26 = vector.broadcast %cst_18 : f32 to vector<8x64xf32>
    %27 = arith.addf %26, %25 : vector<8x64xf32>
    %28 = arith.divf %26, %27 : vector<8x64xf32>
    %29 = vector.extract_strided_slice %16 {offsets = [0, 128], sizes = [8, 64], strides = [1, 1]} : vector<8x256xf32> to vector<8x64xf32>
    %30 = math.tanh %29 : vector<8x64xf32>
    %31 = vector.extract_strided_slice %16 {offsets = [0, 192], sizes = [8, 64], strides = [1, 1]} : vector<8x256xf32> to vector<8x64xf32>
    %32 = arith.negf %31 : vector<8x64xf32>
    %33 = math.exp %32 : vector<8x64xf32>
    %cst_19 = arith.constant 1.000000e+00 : f32
    %34 = vector.broadcast %cst_19 : f32 to vector<8x64xf32>
    %35 = arith.addf %34, %33 : vector<8x64xf32>
    %36 = arith.divf %34, %35 : vector<8x64xf32>
    %37 = arith.mulf %28, %12 : vector<8x64xf32>
    %38 = arith.mulf %22, %30 : vector<8x64xf32>
    %39 = arith.addf %37, %38 : vector<8x64xf32>
    %40 = math.tanh %39 : vector<8x64xf32>
    %41 = arith.mulf %36, %40 : vector<8x64xf32>
    %c8 = arith.constant 8 : index
    %c0_20 = arith.constant 0 : index
    %42 = vector.load %arg9[%c8, %c0_20] : memref<64x256xf32, #tpu.memory_space<vmem>>, vector<8x256xf32>
    %43 = arith.truncf %41 : vector<8x64xf32> to vector<8x64xbf16>
    %cst_21 = arith.constant dense<0.000000e+00> : vector<8x256xf32>
    %44 = tpu.matmul %43, %7, %cst_21 {dimension_numbers = #tpu.dot_dimension_numbers<[1], [0], [0], [1], [0, 0, 1, 1], [], []>} : vector<8x64xbf16>, vector<64x256xbf16>, vector<8x256xf32> -> vector<8x256xf32>
    %45 = arith.addf %42, %44 : vector<8x256xf32>
    %46 = vector.extract_strided_slice %45 {offsets = [0, 0], sizes = [8, 64], strides = [1, 1]} : vector<8x256xf32> to vector<8x64xf32>
    %47 = arith.negf %46 : vector<8x64xf32>
    %48 = math.exp %47 : vector<8x64xf32>
    %cst_22 = arith.constant 1.000000e+00 : f32
    %49 = vector.broadcast %cst_22 : f32 to vector<8x64xf32>
    %50 = arith.addf %49, %48 : vector<8x64xf32>
    %51 = arith.divf %49, %50 : vector<8x64xf32>
    %52 = vector.extract_strided_slice %45 {offsets = [0, 64], sizes = [8, 64], strides = [1, 1]} : vector<8x256xf32> to vector<8x64xf32>
    %53 = arith.negf %52 : vector<8x64xf32>
    %54 = math.exp %53 : vector<8x64xf32>
    %cst_23 = arith.constant 1.000000e+00 : f32
    %55 = vector.broadcast %cst_23 : f32 to vector<8x64xf32>
    %56 = arith.addf %55, %54 : vector<8x64xf32>
    %57 = arith.divf %55, %56 : vector<8x64xf32>
    %58 = vector.extract_strided_slice %45 {offsets = [0, 128], sizes = [8, 64], strides = [1, 1]} : vector<8x256xf32> to vector<8x64xf32>
    %59 = math.tanh %58 : vector<8x64xf32>
    %60 = vector.extract_strided_slice %45 {offsets = [0, 192], sizes = [8, 64], strides = [1, 1]} : vector<8x256xf32> to vector<8x64xf32>
    %61 = arith.negf %60 : vector<8x64xf32>
    %62 = math.exp %61 : vector<8x64xf32>
    %cst_24 = arith.constant 1.000000e+00 : f32
    %63 = vector.broadcast %cst_24 : f32 to vector<8x64xf32>
    %64 = arith.addf %63, %62 : vector<8x64xf32>
    %65 = arith.divf %63, %64 : vector<8x64xf32>
    %66 = arith.mulf %57, %39 : vector<8x64xf32>
    %67 = arith.mulf %51, %59 : vector<8x64xf32>
    %68 = arith.addf %66, %67 : vector<8x64xf32>
    %69 = math.tanh %68 : vector<8x64xf32>
    %70 = arith.mulf %65, %69 : vector<8x64xf32>
    %71 = tpu.concatenate %41, %12 in 1 : vector<8x64xf32>, vector<8x64xf32> -> vector<8x128xf32>
    %72 = arith.truncf %71 : vector<8x128xf32> to vector<8x128xbf16>
    %cst_25 = arith.constant dense<0.000000e+00> : vector<8x256xf32>
    %73 = tpu.matmul %72, %8, %cst_25 {dimension_numbers = #tpu.dot_dimension_numbers<[1], [0], [0], [1], [0, 0, 1, 1], [], []>} : vector<8x128xbf16>, vector<128x256xbf16>, vector<8x256xf32> -> vector<8x256xf32>
    %74 = arith.addf %73, %11 : vector<8x256xf32>
    %75 = vector.extract_strided_slice %74 {offsets = [0, 0], sizes = [8, 64], strides = [1, 1]} : vector<8x256xf32> to vector<8x64xf32>
    %76 = arith.negf %75 : vector<8x64xf32>
    %77 = math.exp %76 : vector<8x64xf32>
    %cst_26 = arith.constant 1.000000e+00 : f32
    %78 = vector.broadcast %cst_26 : f32 to vector<8x64xf32>
    %79 = arith.addf %78, %77 : vector<8x64xf32>
    %80 = arith.divf %78, %79 : vector<8x64xf32>
    %81 = vector.extract_strided_slice %74 {offsets = [0, 64], sizes = [8, 64], strides = [1, 1]} : vector<8x256xf32> to vector<8x64xf32>
    %82 = arith.negf %81 : vector<8x64xf32>
    %83 = math.exp %82 : vector<8x64xf32>
    %cst_27 = arith.constant 1.000000e+00 : f32
    %84 = vector.broadcast %cst_27 : f32 to vector<8x64xf32>
    %85 = arith.addf %84, %83 : vector<8x64xf32>
    %86 = arith.divf %84, %85 : vector<8x64xf32>
    %87 = vector.extract_strided_slice %74 {offsets = [0, 128], sizes = [8, 64], strides = [1, 1]} : vector<8x256xf32> to vector<8x64xf32>
    %88 = math.tanh %87 : vector<8x64xf32>
    %89 = vector.extract_strided_slice %74 {offsets = [0, 192], sizes = [8, 64], strides = [1, 1]} : vector<8x256xf32> to vector<8x64xf32>
    %90 = arith.negf %89 : vector<8x64xf32>
    %91 = math.exp %90 : vector<8x64xf32>
    %cst_28 = arith.constant 1.000000e+00 : f32
    %92 = vector.broadcast %cst_28 : f32 to vector<8x64xf32>
    %93 = arith.addf %92, %91 : vector<8x64xf32>
    %94 = arith.divf %92, %93 : vector<8x64xf32>
    %95 = arith.mulf %86, %12 : vector<8x64xf32>
    %96 = arith.mulf %80, %88 : vector<8x64xf32>
    %97 = arith.addf %95, %96 : vector<8x64xf32>
    %98 = math.tanh %97 : vector<8x64xf32>
    %99 = arith.mulf %94, %98 : vector<8x64xf32>
    %c16 = arith.constant 16 : index
    %c0_29 = arith.constant 0 : index
    %100 = vector.load %arg9[%c16, %c0_29] : memref<64x256xf32, #tpu.memory_space<vmem>>, vector<8x256xf32>
    %101 = arith.truncf %70 : vector<8x64xf32> to vector<8x64xbf16>
    %cst_30 = arith.constant dense<0.000000e+00> : vector<8x256xf32>
    %102 = tpu.matmul %101, %7, %cst_30 {dimension_numbers = #tpu.dot_dimension_numbers<[1], [0], [0], [1], [0, 0, 1, 1], [], []>} : vector<8x64xbf16>, vector<64x256xbf16>, vector<8x256xf32> -> vector<8x256xf32>
    %103 = arith.addf %100, %102 : vector<8x256xf32>
    %104 = vector.extract_strided_slice %103 {offsets = [0, 0], sizes = [8, 64], strides = [1, 1]} : vector<8x256xf32> to vector<8x64xf32>
    %105 = arith.negf %104 : vector<8x64xf32>
    %106 = math.exp %105 : vector<8x64xf32>
    %cst_31 = arith.constant 1.000000e+00 : f32
    %107 = vector.broadcast %cst_31 : f32 to vector<8x64xf32>
    %108 = arith.addf %107, %106 : vector<8x64xf32>
    %109 = arith.divf %107, %108 : vector<8x64xf32>
    %110 = vector.extract_strided_slice %103 {offsets = [0, 64], sizes = [8, 64], strides = [1, 1]} : vector<8x256xf32> to vector<8x64xf32>
    %111 = arith.negf %110 : vector<8x64xf32>
    %112 = math.exp %111 : vector<8x64xf32>
    %cst_32 = arith.constant 1.000000e+00 : f32
    %113 = vector.broadcast %cst_32 : f32 to vector<8x64xf32>
    %114 = arith.addf %113, %112 : vector<8x64xf32>
    %115 = arith.divf %113, %114 : vector<8x64xf32>
    %116 = vector.extract_strided_slice %103 {offsets = [0, 128], sizes = [8, 64], strides = [1, 1]} : vector<8x256xf32> to vector<8x64xf32>
    %117 = math.tanh %116 : vector<8x64xf32>
    %118 = vector.extract_strided_slice %103 {offsets = [0, 192], sizes = [8, 64], strides = [1, 1]} : vector<8x256xf32> to vector<8x64xf32>
    %119 = arith.negf %118 : vector<8x64xf32>
    %120 = math.exp %119 : vector<8x64xf32>
    %cst_33 = arith.constant 1.000000e+00 : f32
    %121 = vector.broadcast %cst_33 : f32 to vector<8x64xf32>
    %122 = arith.addf %121, %120 : vector<8x64xf32>
    %123 = arith.divf %121, %122 : vector<8x64xf32>
    %124 = arith.mulf %115, %68 : vector<8x64xf32>
    %125 = arith.mulf %109, %117 : vector<8x64xf32>
    %126 = arith.addf %124, %125 : vector<8x64xf32>
    %127 = math.tanh %126 : vector<8x64xf32>
    %128 = arith.mulf %123, %127 : vector<8x64xf32>
    %129 = tpu.concatenate %70, %99 in 1 : vector<8x64xf32>, vector<8x64xf32> -> vector<8x128xf32>
    %130 = arith.truncf %129 : vector<8x128xf32> to vector<8x128xbf16>
    %cst_34 = arith.constant dense<0.000000e+00> : vector<8x256xf32>
    %131 = tpu.matmul %130, %8, %cst_34 {dimension_numbers = #tpu.dot_dimension_numbers<[1], [0], [0], [1], [0, 0, 1, 1], [], []>} : vector<8x128xbf16>, vector<128x256xbf16>, vector<8x256xf32> -> vector<8x256xf32>
    %132 = arith.addf %131, %11 : vector<8x256xf32>
    %133 = vector.extract_strided_slice %132 {offsets = [0, 0], sizes = [8, 64], strides = [1, 1]} : vector<8x256xf32> to vector<8x64xf32>
    %134 = arith.negf %133 : vector<8x64xf32>
    %135 = math.exp %134 : vector<8x64xf32>
    %cst_35 = arith.constant 1.000000e+00 : f32
    %136 = vector.broadcast %cst_35 : f32 to vector<8x64xf32>
    %137 = arith.addf %136, %135 : vector<8x64xf32>
    %138 = arith.divf %136, %137 : vector<8x64xf32>
    %139 = vector.extract_strided_slice %132 {offsets = [0, 64], sizes = [8, 64], strides = [1, 1]} : vector<8x256xf32> to vector<8x64xf32>
    %140 = arith.negf %139 : vector<8x64xf32>
    %141 = math.exp %140 : vector<8x64xf32>
    %cst_36 = arith.constant 1.000000e+00 : f32
    %142 = vector.broadcast %cst_36 : f32 to vector<8x64xf32>
    %143 = arith.addf %142, %141 : vector<8x64xf32>
    %144 = arith.divf %142, %143 : vector<8x64xf32>
    %145 = vector.extract_strided_slice %132 {offsets = [0, 128], sizes = [8, 64], strides = [1, 1]} : vector<8x256xf32> to vector<8x64xf32>
    %146 = math.tanh %145 : vector<8x64xf32>
    %147 = vector.extract_strided_slice %132 {offsets = [0, 192], sizes = [8, 64], strides = [1, 1]} : vector<8x256xf32> to vector<8x64xf32>
    %148 = arith.negf %147 : vector<8x64xf32>
    %149 = math.exp %148 : vector<8x64xf32>
    %cst_37 = arith.constant 1.000000e+00 : f32
    %150 = vector.broadcast %cst_37 : f32 to vector<8x64xf32>
    %151 = arith.addf %150, %149 : vector<8x64xf32>
    %152 = arith.divf %150, %151 : vector<8x64xf32>
    %153 = arith.mulf %144, %97 : vector<8x64xf32>
    %154 = arith.mulf %138, %146 : vector<8x64xf32>
    %155 = arith.addf %153, %154 : vector<8x64xf32>
    %156 = math.tanh %155 : vector<8x64xf32>
    %157 = arith.mulf %152, %156 : vector<8x64xf32>
    %c24 = arith.constant 24 : index
    %c0_38 = arith.constant 0 : index
    %158 = vector.load %arg9[%c24, %c0_38] : memref<64x256xf32, #tpu.memory_space<vmem>>, vector<8x256xf32>
    %159 = arith.truncf %128 : vector<8x64xf32> to vector<8x64xbf16>
    %cst_39 = arith.constant dense<0.000000e+00> : vector<8x256xf32>
    %160 = tpu.matmul %159, %7, %cst_39 {dimension_numbers = #tpu.dot_dimension_numbers<[1], [0], [0], [1], [0, 0, 1, 1], [], []>} : vector<8x64xbf16>, vector<64x256xbf16>, vector<8x256xf32> -> vector<8x256xf32>
    %161 = arith.addf %158, %160 : vector<8x256xf32>
    %162 = vector.extract_strided_slice %161 {offsets = [0, 0], sizes = [8, 64], strides = [1, 1]} : vector<8x256xf32> to vector<8x64xf32>
    %163 = arith.negf %162 : vector<8x64xf32>
    %164 = math.exp %163 : vector<8x64xf32>
    %cst_40 = arith.constant 1.000000e+00 : f32
    %165 = vector.broadcast %cst_40 : f32 to vector<8x64xf32>
    %166 = arith.addf %165, %164 : vector<8x64xf32>
    %167 = arith.divf %165, %166 : vector<8x64xf32>
    %168 = vector.extract_strided_slice %161 {offsets = [0, 64], sizes = [8, 64], strides = [1, 1]} : vector<8x256xf32> to vector<8x64xf32>
    %169 = arith.negf %168 : vector<8x64xf32>
    %170 = math.exp %169 : vector<8x64xf32>
    %cst_41 = arith.constant 1.000000e+00 : f32
    %171 = vector.broadcast %cst_41 : f32 to vector<8x64xf32>
    %172 = arith.addf %171, %170 : vector<8x64xf32>
    %173 = arith.divf %171, %172 : vector<8x64xf32>
    %174 = vector.extract_strided_slice %161 {offsets = [0, 128], sizes = [8, 64], strides = [1, 1]} : vector<8x256xf32> to vector<8x64xf32>
    %175 = math.tanh %174 : vector<8x64xf32>
    %176 = vector.extract_strided_slice %161 {offsets = [0, 192], sizes = [8, 64], strides = [1, 1]} : vector<8x256xf32> to vector<8x64xf32>
    %177 = arith.negf %176 : vector<8x64xf32>
    %178 = math.exp %177 : vector<8x64xf32>
    %cst_42 = arith.constant 1.000000e+00 : f32
    %179 = vector.broadcast %cst_42 : f32 to vector<8x64xf32>
    %180 = arith.addf %179, %178 : vector<8x64xf32>
    %181 = arith.divf %179, %180 : vector<8x64xf32>
    %182 = arith.mulf %173, %126 : vector<8x64xf32>
    %183 = arith.mulf %167, %175 : vector<8x64xf32>
    %184 = arith.addf %182, %183 : vector<8x64xf32>
    %185 = math.tanh %184 : vector<8x64xf32>
    %186 = arith.mulf %181, %185 : vector<8x64xf32>
    %187 = tpu.concatenate %128, %157 in 1 : vector<8x64xf32>, vector<8x64xf32> -> vector<8x128xf32>
    %188 = arith.truncf %187 : vector<8x128xf32> to vector<8x128xbf16>
    %cst_43 = arith.constant dense<0.000000e+00> : vector<8x256xf32>
    %189 = tpu.matmul %188, %8, %cst_43 {dimension_numbers = #tpu.dot_dimension_numbers<[1], [0], [0], [1], [0, 0, 1, 1], [], []>} : vector<8x128xbf16>, vector<128x256xbf16>, vector<8x256xf32> -> vector<8x256xf32>
    %190 = arith.addf %189, %11 : vector<8x256xf32>
    %191 = vector.extract_strided_slice %190 {offsets = [0, 0], sizes = [8, 64], strides = [1, 1]} : vector<8x256xf32> to vector<8x64xf32>
    %192 = arith.negf %191 : vector<8x64xf32>
    %193 = math.exp %192 : vector<8x64xf32>
    %cst_44 = arith.constant 1.000000e+00 : f32
    %194 = vector.broadcast %cst_44 : f32 to vector<8x64xf32>
    %195 = arith.addf %194, %193 : vector<8x64xf32>
    %196 = arith.divf %194, %195 : vector<8x64xf32>
    %197 = vector.extract_strided_slice %190 {offsets = [0, 64], sizes = [8, 64], strides = [1, 1]} : vector<8x256xf32> to vector<8x64xf32>
    %198 = arith.negf %197 : vector<8x64xf32>
    %199 = math.exp %198 : vector<8x64xf32>
    %cst_45 = arith.constant 1.000000e+00 : f32
    %200 = vector.broadcast %cst_45 : f32 to vector<8x64xf32>
    %201 = arith.addf %200, %199 : vector<8x64xf32>
    %202 = arith.divf %200, %201 : vector<8x64xf32>
    %203 = vector.extract_strided_slice %190 {offsets = [0, 128], sizes = [8, 64], strides = [1, 1]} : vector<8x256xf32> to vector<8x64xf32>
    %204 = math.tanh %203 : vector<8x64xf32>
    %205 = vector.extract_strided_slice %190 {offsets = [0, 192], sizes = [8, 64], strides = [1, 1]} : vector<8x256xf32> to vector<8x64xf32>
    %206 = arith.negf %205 : vector<8x64xf32>
    %207 = math.exp %206 : vector<8x64xf32>
    %cst_46 = arith.constant 1.000000e+00 : f32
    %208 = vector.broadcast %cst_46 : f32 to vector<8x64xf32>
    %209 = arith.addf %208, %207 : vector<8x64xf32>
    %210 = arith.divf %208, %209 : vector<8x64xf32>
    %211 = arith.mulf %202, %155 : vector<8x64xf32>
    %212 = arith.mulf %196, %204 : vector<8x64xf32>
    %213 = arith.addf %211, %212 : vector<8x64xf32>
    %214 = math.tanh %213 : vector<8x64xf32>
    %215 = arith.mulf %210, %214 : vector<8x64xf32>
    %c32 = arith.constant 32 : index
    %c0_47 = arith.constant 0 : index
    %216 = vector.load %arg9[%c32, %c0_47] : memref<64x256xf32, #tpu.memory_space<vmem>>, vector<8x256xf32>
    %217 = arith.truncf %186 : vector<8x64xf32> to vector<8x64xbf16>
    %cst_48 = arith.constant dense<0.000000e+00> : vector<8x256xf32>
    %218 = tpu.matmul %217, %7, %cst_48 {dimension_numbers = #tpu.dot_dimension_numbers<[1], [0], [0], [1], [0, 0, 1, 1], [], []>} : vector<8x64xbf16>, vector<64x256xbf16>, vector<8x256xf32> -> vector<8x256xf32>
    %219 = arith.addf %216, %218 : vector<8x256xf32>
    %220 = vector.extract_strided_slice %219 {offsets = [0, 0], sizes = [8, 64], strides = [1, 1]} : vector<8x256xf32> to vector<8x64xf32>
    %221 = arith.negf %220 : vector<8x64xf32>
    %222 = math.exp %221 : vector<8x64xf32>
    %cst_49 = arith.constant 1.000000e+00 : f32
    %223 = vector.broadcast %cst_49 : f32 to vector<8x64xf32>
    %224 = arith.addf %223, %222 : vector<8x64xf32>
    %225 = arith.divf %223, %224 : vector<8x64xf32>
    %226 = vector.extract_strided_slice %219 {offsets = [0, 64], sizes = [8, 64], strides = [1, 1]} : vector<8x256xf32> to vector<8x64xf32>
    %227 = arith.negf %226 : vector<8x64xf32>
    %228 = math.exp %227 : vector<8x64xf32>
    %cst_50 = arith.constant 1.000000e+00 : f32
    %229 = vector.broadcast %cst_50 : f32 to vector<8x64xf32>
    %230 = arith.addf %229, %228 : vector<8x64xf32>
    %231 = arith.divf %229, %230 : vector<8x64xf32>
    %232 = vector.extract_strided_slice %219 {offsets = [0, 128], sizes = [8, 64], strides = [1, 1]} : vector<8x256xf32> to vector<8x64xf32>
    %233 = math.tanh %232 : vector<8x64xf32>
    %234 = vector.extract_strided_slice %219 {offsets = [0, 192], sizes = [8, 64], strides = [1, 1]} : vector<8x256xf32> to vector<8x64xf32>
    %235 = arith.negf %234 : vector<8x64xf32>
    %236 = math.exp %235 : vector<8x64xf32>
    %cst_51 = arith.constant 1.000000e+00 : f32
    %237 = vector.broadcast %cst_51 : f32 to vector<8x64xf32>
    %238 = arith.addf %237, %236 : vector<8x64xf32>
    %239 = arith.divf %237, %238 : vector<8x64xf32>
    %240 = arith.mulf %231, %184 : vector<8x64xf32>
    %241 = arith.mulf %225, %233 : vector<8x64xf32>
    %242 = arith.addf %240, %241 : vector<8x64xf32>
    %243 = math.tanh %242 : vector<8x64xf32>
    %244 = arith.mulf %239, %243 : vector<8x64xf32>
    %245 = tpu.concatenate %186, %215 in 1 : vector<8x64xf32>, vector<8x64xf32> -> vector<8x128xf32>
    %246 = arith.truncf %245 : vector<8x128xf32> to vector<8x128xbf16>
    %cst_52 = arith.constant dense<0.000000e+00> : vector<8x256xf32>
    %247 = tpu.matmul %246, %8, %cst_52 {dimension_numbers = #tpu.dot_dimension_numbers<[1], [0], [0], [1], [0, 0, 1, 1], [], []>} : vector<8x128xbf16>, vector<128x256xbf16>, vector<8x256xf32> -> vector<8x256xf32>
    %248 = arith.addf %247, %11 : vector<8x256xf32>
    %249 = vector.extract_strided_slice %248 {offsets = [0, 0], sizes = [8, 64], strides = [1, 1]} : vector<8x256xf32> to vector<8x64xf32>
    %250 = arith.negf %249 : vector<8x64xf32>
    %251 = math.exp %250 : vector<8x64xf32>
    %cst_53 = arith.constant 1.000000e+00 : f32
    %252 = vector.broadcast %cst_53 : f32 to vector<8x64xf32>
    %253 = arith.addf %252, %251 : vector<8x64xf32>
    %254 = arith.divf %252, %253 : vector<8x64xf32>
    %255 = vector.extract_strided_slice %248 {offsets = [0, 64], sizes = [8, 64], strides = [1, 1]} : vector<8x256xf32> to vector<8x64xf32>
    %256 = arith.negf %255 : vector<8x64xf32>
    %257 = math.exp %256 : vector<8x64xf32>
    %cst_54 = arith.constant 1.000000e+00 : f32
    %258 = vector.broadcast %cst_54 : f32 to vector<8x64xf32>
    %259 = arith.addf %258, %257 : vector<8x64xf32>
    %260 = arith.divf %258, %259 : vector<8x64xf32>
    %261 = vector.extract_strided_slice %248 {offsets = [0, 128], sizes = [8, 64], strides = [1, 1]} : vector<8x256xf32> to vector<8x64xf32>
    %262 = math.tanh %261 : vector<8x64xf32>
    %263 = vector.extract_strided_slice %248 {offsets = [0, 192], sizes = [8, 64], strides = [1, 1]} : vector<8x256xf32> to vector<8x64xf32>
    %264 = arith.negf %263 : vector<8x64xf32>
    %265 = math.exp %264 : vector<8x64xf32>
    %cst_55 = arith.constant 1.000000e+00 : f32
    %266 = vector.broadcast %cst_55 : f32 to vector<8x64xf32>
    %267 = arith.addf %266, %265 : vector<8x64xf32>
    %268 = arith.divf %266, %267 : vector<8x64xf32>
    %269 = arith.mulf %260, %213 : vector<8x64xf32>
    %270 = arith.mulf %254, %262 : vector<8x64xf32>
    %271 = arith.addf %269, %270 : vector<8x64xf32>
    %272 = math.tanh %271 : vector<8x64xf32>
    %273 = arith.mulf %268, %272 : vector<8x64xf32>
    %c40 = arith.constant 40 : index
    %c0_56 = arith.constant 0 : index
    %274 = vector.load %arg9[%c40, %c0_56] : memref<64x256xf32, #tpu.memory_space<vmem>>, vector<8x256xf32>
    %275 = arith.truncf %244 : vector<8x64xf32> to vector<8x64xbf16>
    %cst_57 = arith.constant dense<0.000000e+00> : vector<8x256xf32>
    %276 = tpu.matmul %275, %7, %cst_57 {dimension_numbers = #tpu.dot_dimension_numbers<[1], [0], [0], [1], [0, 0, 1, 1], [], []>} : vector<8x64xbf16>, vector<64x256xbf16>, vector<8x256xf32> -> vector<8x256xf32>
    %277 = arith.addf %274, %276 : vector<8x256xf32>
    %278 = vector.extract_strided_slice %277 {offsets = [0, 0], sizes = [8, 64], strides = [1, 1]} : vector<8x256xf32> to vector<8x64xf32>
    %279 = arith.negf %278 : vector<8x64xf32>
    %280 = math.exp %279 : vector<8x64xf32>
    %cst_58 = arith.constant 1.000000e+00 : f32
    %281 = vector.broadcast %cst_58 : f32 to vector<8x64xf32>
    %282 = arith.addf %281, %280 : vector<8x64xf32>
    %283 = arith.divf %281, %282 : vector<8x64xf32>
    %284 = vector.extract_strided_slice %277 {offsets = [0, 64], sizes = [8, 64], strides = [1, 1]} : vector<8x256xf32> to vector<8x64xf32>
    %285 = arith.negf %284 : vector<8x64xf32>
    %286 = math.exp %285 : vector<8x64xf32>
    %cst_59 = arith.constant 1.000000e+00 : f32
    %287 = vector.broadcast %cst_59 : f32 to vector<8x64xf32>
    %288 = arith.addf %287, %286 : vector<8x64xf32>
    %289 = arith.divf %287, %288 : vector<8x64xf32>
    %290 = vector.extract_strided_slice %277 {offsets = [0, 128], sizes = [8, 64], strides = [1, 1]} : vector<8x256xf32> to vector<8x64xf32>
    %291 = math.tanh %290 : vector<8x64xf32>
    %292 = vector.extract_strided_slice %277 {offsets = [0, 192], sizes = [8, 64], strides = [1, 1]} : vector<8x256xf32> to vector<8x64xf32>
    %293 = arith.negf %292 : vector<8x64xf32>
    %294 = math.exp %293 : vector<8x64xf32>
    %cst_60 = arith.constant 1.000000e+00 : f32
    %295 = vector.broadcast %cst_60 : f32 to vector<8x64xf32>
    %296 = arith.addf %295, %294 : vector<8x64xf32>
    %297 = arith.divf %295, %296 : vector<8x64xf32>
    %298 = arith.mulf %289, %242 : vector<8x64xf32>
    %299 = arith.mulf %283, %291 : vector<8x64xf32>
    %300 = arith.addf %298, %299 : vector<8x64xf32>
    %301 = math.tanh %300 : vector<8x64xf32>
    %302 = arith.mulf %297, %301 : vector<8x64xf32>
    %303 = tpu.concatenate %244, %273 in 1 : vector<8x64xf32>, vector<8x64xf32> -> vector<8x128xf32>
    %304 = arith.truncf %303 : vector<8x128xf32> to vector<8x128xbf16>
    %cst_61 = arith.constant dense<0.000000e+00> : vector<8x256xf32>
    %305 = tpu.matmul %304, %8, %cst_61 {dimension_numbers = #tpu.dot_dimension_numbers<[1], [0], [0], [1], [0, 0, 1, 1], [], []>} : vector<8x128xbf16>, vector<128x256xbf16>, vector<8x256xf32> -> vector<8x256xf32>
    %306 = arith.addf %305, %11 : vector<8x256xf32>
    %307 = vector.extract_strided_slice %306 {offsets = [0, 0], sizes = [8, 64], strides = [1, 1]} : vector<8x256xf32> to vector<8x64xf32>
    %308 = arith.negf %307 : vector<8x64xf32>
    %309 = math.exp %308 : vector<8x64xf32>
    %cst_62 = arith.constant 1.000000e+00 : f32
    %310 = vector.broadcast %cst_62 : f32 to vector<8x64xf32>
    %311 = arith.addf %310, %309 : vector<8x64xf32>
    %312 = arith.divf %310, %311 : vector<8x64xf32>
    %313 = vector.extract_strided_slice %306 {offsets = [0, 64], sizes = [8, 64], strides = [1, 1]} : vector<8x256xf32> to vector<8x64xf32>
    %314 = arith.negf %313 : vector<8x64xf32>
    %315 = math.exp %314 : vector<8x64xf32>
    %cst_63 = arith.constant 1.000000e+00 : f32
    %316 = vector.broadcast %cst_63 : f32 to vector<8x64xf32>
    %317 = arith.addf %316, %315 : vector<8x64xf32>
    %318 = arith.divf %316, %317 : vector<8x64xf32>
    %319 = vector.extract_strided_slice %306 {offsets = [0, 128], sizes = [8, 64], strides = [1, 1]} : vector<8x256xf32> to vector<8x64xf32>
    %320 = math.tanh %319 : vector<8x64xf32>
    %321 = vector.extract_strided_slice %306 {offsets = [0, 192], sizes = [8, 64], strides = [1, 1]} : vector<8x256xf32> to vector<8x64xf32>
    %322 = arith.negf %321 : vector<8x64xf32>
    %323 = math.exp %322 : vector<8x64xf32>
    %cst_64 = arith.constant 1.000000e+00 : f32
    %324 = vector.broadcast %cst_64 : f32 to vector<8x64xf32>
    %325 = arith.addf %324, %323 : vector<8x64xf32>
    %326 = arith.divf %324, %325 : vector<8x64xf32>
    %327 = arith.mulf %318, %271 : vector<8x64xf32>
    %328 = arith.mulf %312, %320 : vector<8x64xf32>
    %329 = arith.addf %327, %328 : vector<8x64xf32>
    %330 = math.tanh %329 : vector<8x64xf32>
    %331 = arith.mulf %326, %330 : vector<8x64xf32>
    %c48 = arith.constant 48 : index
    %c0_65 = arith.constant 0 : index
    %332 = vector.load %arg9[%c48, %c0_65] : memref<64x256xf32, #tpu.memory_space<vmem>>, vector<8x256xf32>
    %333 = arith.truncf %302 : vector<8x64xf32> to vector<8x64xbf16>
    %cst_66 = arith.constant dense<0.000000e+00> : vector<8x256xf32>
    %334 = tpu.matmul %333, %7, %cst_66 {dimension_numbers = #tpu.dot_dimension_numbers<[1], [0], [0], [1], [0, 0, 1, 1], [], []>} : vector<8x64xbf16>, vector<64x256xbf16>, vector<8x256xf32> -> vector<8x256xf32>
    %335 = arith.addf %332, %334 : vector<8x256xf32>
    %336 = vector.extract_strided_slice %335 {offsets = [0, 0], sizes = [8, 64], strides = [1, 1]} : vector<8x256xf32> to vector<8x64xf32>
    %337 = arith.negf %336 : vector<8x64xf32>
    %338 = math.exp %337 : vector<8x64xf32>
    %cst_67 = arith.constant 1.000000e+00 : f32
    %339 = vector.broadcast %cst_67 : f32 to vector<8x64xf32>
    %340 = arith.addf %339, %338 : vector<8x64xf32>
    %341 = arith.divf %339, %340 : vector<8x64xf32>
    %342 = vector.extract_strided_slice %335 {offsets = [0, 64], sizes = [8, 64], strides = [1, 1]} : vector<8x256xf32> to vector<8x64xf32>
    %343 = arith.negf %342 : vector<8x64xf32>
    %344 = math.exp %343 : vector<8x64xf32>
    %cst_68 = arith.constant 1.000000e+00 : f32
    %345 = vector.broadcast %cst_68 : f32 to vector<8x64xf32>
    %346 = arith.addf %345, %344 : vector<8x64xf32>
    %347 = arith.divf %345, %346 : vector<8x64xf32>
    %348 = vector.extract_strided_slice %335 {offsets = [0, 128], sizes = [8, 64], strides = [1, 1]} : vector<8x256xf32> to vector<8x64xf32>
    %349 = math.tanh %348 : vector<8x64xf32>
    %350 = vector.extract_strided_slice %335 {offsets = [0, 192], sizes = [8, 64], strides = [1, 1]} : vector<8x256xf32> to vector<8x64xf32>
    %351 = arith.negf %350 : vector<8x64xf32>
    %352 = math.exp %351 : vector<8x64xf32>
    %cst_69 = arith.constant 1.000000e+00 : f32
    %353 = vector.broadcast %cst_69 : f32 to vector<8x64xf32>
    %354 = arith.addf %353, %352 : vector<8x64xf32>
    %355 = arith.divf %353, %354 : vector<8x64xf32>
    %356 = arith.mulf %347, %300 : vector<8x64xf32>
    %357 = arith.mulf %341, %349 : vector<8x64xf32>
    %358 = arith.addf %356, %357 : vector<8x64xf32>
    %359 = math.tanh %358 : vector<8x64xf32>
    %360 = arith.mulf %355, %359 : vector<8x64xf32>
    %361 = tpu.concatenate %302, %331 in 1 : vector<8x64xf32>, vector<8x64xf32> -> vector<8x128xf32>
    %362 = arith.truncf %361 : vector<8x128xf32> to vector<8x128xbf16>
    %cst_70 = arith.constant dense<0.000000e+00> : vector<8x256xf32>
    %363 = tpu.matmul %362, %8, %cst_70 {dimension_numbers = #tpu.dot_dimension_numbers<[1], [0], [0], [1], [0, 0, 1, 1], [], []>} : vector<8x128xbf16>, vector<128x256xbf16>, vector<8x256xf32> -> vector<8x256xf32>
    %364 = arith.addf %363, %11 : vector<8x256xf32>
    %365 = vector.extract_strided_slice %364 {offsets = [0, 0], sizes = [8, 64], strides = [1, 1]} : vector<8x256xf32> to vector<8x64xf32>
    %366 = arith.negf %365 : vector<8x64xf32>
    %367 = math.exp %366 : vector<8x64xf32>
    %cst_71 = arith.constant 1.000000e+00 : f32
    %368 = vector.broadcast %cst_71 : f32 to vector<8x64xf32>
    %369 = arith.addf %368, %367 : vector<8x64xf32>
    %370 = arith.divf %368, %369 : vector<8x64xf32>
    %371 = vector.extract_strided_slice %364 {offsets = [0, 64], sizes = [8, 64], strides = [1, 1]} : vector<8x256xf32> to vector<8x64xf32>
    %372 = arith.negf %371 : vector<8x64xf32>
    %373 = math.exp %372 : vector<8x64xf32>
    %cst_72 = arith.constant 1.000000e+00 : f32
    %374 = vector.broadcast %cst_72 : f32 to vector<8x64xf32>
    %375 = arith.addf %374, %373 : vector<8x64xf32>
    %376 = arith.divf %374, %375 : vector<8x64xf32>
    %377 = vector.extract_strided_slice %364 {offsets = [0, 128], sizes = [8, 64], strides = [1, 1]} : vector<8x256xf32> to vector<8x64xf32>
    %378 = math.tanh %377 : vector<8x64xf32>
    %379 = vector.extract_strided_slice %364 {offsets = [0, 192], sizes = [8, 64], strides = [1, 1]} : vector<8x256xf32> to vector<8x64xf32>
    %380 = arith.negf %379 : vector<8x64xf32>
    %381 = math.exp %380 : vector<8x64xf32>
    %cst_73 = arith.constant 1.000000e+00 : f32
    %382 = vector.broadcast %cst_73 : f32 to vector<8x64xf32>
    %383 = arith.addf %382, %381 : vector<8x64xf32>
    %384 = arith.divf %382, %383 : vector<8x64xf32>
    %385 = arith.mulf %376, %329 : vector<8x64xf32>
    %386 = arith.mulf %370, %378 : vector<8x64xf32>
    %387 = arith.addf %385, %386 : vector<8x64xf32>
    %388 = math.tanh %387 : vector<8x64xf32>
    %389 = arith.mulf %384, %388 : vector<8x64xf32>
    %c56 = arith.constant 56 : index
    %c0_74 = arith.constant 0 : index
    %390 = vector.load %arg9[%c56, %c0_74] : memref<64x256xf32, #tpu.memory_space<vmem>>, vector<8x256xf32>
    %391 = arith.truncf %360 : vector<8x64xf32> to vector<8x64xbf16>
    %cst_75 = arith.constant dense<0.000000e+00> : vector<8x256xf32>
    %392 = tpu.matmul %391, %7, %cst_75 {dimension_numbers = #tpu.dot_dimension_numbers<[1], [0], [0], [1], [0, 0, 1, 1], [], []>} : vector<8x64xbf16>, vector<64x256xbf16>, vector<8x256xf32> -> vector<8x256xf32>
    %393 = arith.addf %390, %392 : vector<8x256xf32>
    %394 = vector.extract_strided_slice %393 {offsets = [0, 0], sizes = [8, 64], strides = [1, 1]} : vector<8x256xf32> to vector<8x64xf32>
    %395 = arith.negf %394 : vector<8x64xf32>
    %396 = math.exp %395 : vector<8x64xf32>
    %cst_76 = arith.constant 1.000000e+00 : f32
    %397 = vector.broadcast %cst_76 : f32 to vector<8x64xf32>
    %398 = arith.addf %397, %396 : vector<8x64xf32>
    %399 = arith.divf %397, %398 : vector<8x64xf32>
    %400 = vector.extract_strided_slice %393 {offsets = [0, 64], sizes = [8, 64], strides = [1, 1]} : vector<8x256xf32> to vector<8x64xf32>
    %401 = arith.negf %400 : vector<8x64xf32>
    %402 = math.exp %401 : vector<8x64xf32>
    %cst_77 = arith.constant 1.000000e+00 : f32
    %403 = vector.broadcast %cst_77 : f32 to vector<8x64xf32>
    %404 = arith.addf %403, %402 : vector<8x64xf32>
    %405 = arith.divf %403, %404 : vector<8x64xf32>
    %406 = vector.extract_strided_slice %393 {offsets = [0, 128], sizes = [8, 64], strides = [1, 1]} : vector<8x256xf32> to vector<8x64xf32>
    %407 = math.tanh %406 : vector<8x64xf32>
    %408 = vector.extract_strided_slice %393 {offsets = [0, 192], sizes = [8, 64], strides = [1, 1]} : vector<8x256xf32> to vector<8x64xf32>
    %409 = arith.negf %408 : vector<8x64xf32>
    %410 = math.exp %409 : vector<8x64xf32>
    %cst_78 = arith.constant 1.000000e+00 : f32
    %411 = vector.broadcast %cst_78 : f32 to vector<8x64xf32>
    %412 = arith.addf %411, %410 : vector<8x64xf32>
    %413 = arith.divf %411, %412 : vector<8x64xf32>
    %414 = arith.mulf %405, %358 : vector<8x64xf32>
    %415 = arith.mulf %399, %407 : vector<8x64xf32>
    %416 = arith.addf %414, %415 : vector<8x64xf32>
    %417 = math.tanh %416 : vector<8x64xf32>
    %418 = arith.mulf %413, %417 : vector<8x64xf32>
    %419 = tpu.concatenate %360, %389 in 1 : vector<8x64xf32>, vector<8x64xf32> -> vector<8x128xf32>
    %420 = arith.truncf %419 : vector<8x128xf32> to vector<8x128xbf16>
    %cst_79 = arith.constant dense<0.000000e+00> : vector<8x256xf32>
    %421 = tpu.matmul %420, %8, %cst_79 {dimension_numbers = #tpu.dot_dimension_numbers<[1], [0], [0], [1], [0, 0, 1, 1], [], []>} : vector<8x128xbf16>, vector<128x256xbf16>, vector<8x256xf32> -> vector<8x256xf32>
    %422 = arith.addf %421, %11 : vector<8x256xf32>
    %423 = vector.extract_strided_slice %422 {offsets = [0, 0], sizes = [8, 64], strides = [1, 1]} : vector<8x256xf32> to vector<8x64xf32>
    %424 = arith.negf %423 : vector<8x64xf32>
    %425 = math.exp %424 : vector<8x64xf32>
    %cst_80 = arith.constant 1.000000e+00 : f32
    %426 = vector.broadcast %cst_80 : f32 to vector<8x64xf32>
    %427 = arith.addf %426, %425 : vector<8x64xf32>
    %428 = arith.divf %426, %427 : vector<8x64xf32>
    %429 = vector.extract_strided_slice %422 {offsets = [0, 64], sizes = [8, 64], strides = [1, 1]} : vector<8x256xf32> to vector<8x64xf32>
    %430 = arith.negf %429 : vector<8x64xf32>
    %431 = math.exp %430 : vector<8x64xf32>
    %cst_81 = arith.constant 1.000000e+00 : f32
    %432 = vector.broadcast %cst_81 : f32 to vector<8x64xf32>
    %433 = arith.addf %432, %431 : vector<8x64xf32>
    %434 = arith.divf %432, %433 : vector<8x64xf32>
    %435 = vector.extract_strided_slice %422 {offsets = [0, 128], sizes = [8, 64], strides = [1, 1]} : vector<8x256xf32> to vector<8x64xf32>
    %436 = math.tanh %435 : vector<8x64xf32>
    %437 = vector.extract_strided_slice %422 {offsets = [0, 192], sizes = [8, 64], strides = [1, 1]} : vector<8x256xf32> to vector<8x64xf32>
    %438 = arith.negf %437 : vector<8x64xf32>
    %439 = math.exp %438 : vector<8x64xf32>
    %cst_82 = arith.constant 1.000000e+00 : f32
    %440 = vector.broadcast %cst_82 : f32 to vector<8x64xf32>
    %441 = arith.addf %440, %439 : vector<8x64xf32>
    %442 = arith.divf %440, %441 : vector<8x64xf32>
    %443 = arith.mulf %434, %387 : vector<8x64xf32>
    %444 = arith.mulf %428, %436 : vector<8x64xf32>
    %445 = arith.addf %443, %444 : vector<8x64xf32>
    %446 = math.tanh %445 : vector<8x64xf32>
    %447 = arith.mulf %442, %446 : vector<8x64xf32>
    %448 = tpu.concatenate %418, %447 in 1 : vector<8x64xf32>, vector<8x64xf32> -> vector<8x128xf32>
    %449 = arith.truncf %448 : vector<8x128xf32> to vector<8x128xbf16>
    %cst_83 = arith.constant dense<0.000000e+00> : vector<8x256xf32>
    %450 = tpu.matmul %449, %8, %cst_83 {dimension_numbers = #tpu.dot_dimension_numbers<[1], [0], [0], [1], [0, 0, 1, 1], [], []>} : vector<8x128xbf16>, vector<128x256xbf16>, vector<8x256xf32> -> vector<8x256xf32>
    %451 = arith.addf %450, %11 : vector<8x256xf32>
    %452 = vector.extract_strided_slice %451 {offsets = [0, 0], sizes = [8, 64], strides = [1, 1]} : vector<8x256xf32> to vector<8x64xf32>
    %453 = arith.negf %452 : vector<8x64xf32>
    %454 = math.exp %453 : vector<8x64xf32>
    %cst_84 = arith.constant 1.000000e+00 : f32
    %455 = vector.broadcast %cst_84 : f32 to vector<8x64xf32>
    %456 = arith.addf %455, %454 : vector<8x64xf32>
    %457 = arith.divf %455, %456 : vector<8x64xf32>
    %458 = vector.extract_strided_slice %451 {offsets = [0, 64], sizes = [8, 64], strides = [1, 1]} : vector<8x256xf32> to vector<8x64xf32>
    %459 = arith.negf %458 : vector<8x64xf32>
    %460 = math.exp %459 : vector<8x64xf32>
    %cst_85 = arith.constant 1.000000e+00 : f32
    %461 = vector.broadcast %cst_85 : f32 to vector<8x64xf32>
    %462 = arith.addf %461, %460 : vector<8x64xf32>
    %463 = arith.divf %461, %462 : vector<8x64xf32>
    %464 = vector.extract_strided_slice %451 {offsets = [0, 128], sizes = [8, 64], strides = [1, 1]} : vector<8x256xf32> to vector<8x64xf32>
    %465 = math.tanh %464 : vector<8x64xf32>
    %466 = vector.extract_strided_slice %451 {offsets = [0, 192], sizes = [8, 64], strides = [1, 1]} : vector<8x256xf32> to vector<8x64xf32>
    %467 = arith.negf %466 : vector<8x64xf32>
    %468 = math.exp %467 : vector<8x64xf32>
    %cst_86 = arith.constant 1.000000e+00 : f32
    %469 = vector.broadcast %cst_86 : f32 to vector<8x64xf32>
    %470 = arith.addf %469, %468 : vector<8x64xf32>
    %471 = arith.divf %469, %470 : vector<8x64xf32>
    %472 = arith.mulf %463, %445 : vector<8x64xf32>
    %473 = arith.mulf %457, %465 : vector<8x64xf32>
    %474 = arith.addf %472, %473 : vector<8x64xf32>
    %475 = math.tanh %474 : vector<8x64xf32>
    %476 = arith.mulf %471, %475 : vector<8x64xf32>
    %477 = arith.truncf %476 : vector<8x64xf32> to vector<8x64xbf16>
    %c0_87 = arith.constant 0 : index
    %c0_88 = arith.constant 0 : index
    %478 = vector.load %arg6[%c0_87, %c0_88] : memref<64x128xbf16, #tpu.memory_space<vmem>>, vector<64x128xbf16>
    %cst_89 = arith.constant dense<0.000000e+00> : vector<8x128xf32>
    %479 = tpu.matmul %477, %478, %cst_89 {dimension_numbers = #tpu.dot_dimension_numbers<[1], [0], [0], [1], [0, 0, 1, 1], [], []>} : vector<8x64xbf16>, vector<64x128xbf16>, vector<8x128xf32> -> vector<8x128xf32>
    %c0_90 = arith.constant 0 : index
    %c0_91 = arith.constant 0 : index
    %480 = vector.load %arg7[%c0_90, %c0_91] : memref<1x128xf32, #tpu.memory_space<vmem>>, vector<1x128xf32>
    %481 = vector.broadcast %480 : vector<1x128xf32> to vector<8x128xf32>
    %482 = arith.addf %479, %481 : vector<8x128xf32>
    %c0_92 = arith.constant 0 : index
    %c0_93 = arith.constant 0 : index
    %483 = vector.load %arg8[%c0_92, %c0_93] : memref<8x128xf32, #tpu.memory_space<vmem>>, vector<8x128xf32>
    tpu.vector_store %arg8[%c0_92, %c0_93], %482 {strides = array<i32>} : memref<8x128xf32, #tpu.memory_space<vmem>>, vector<8x128xf32>,
    return
  }
}

</mosaic_0001>

<llo_original>
// kernel: rnn_forward.1
$region0: #{rnn_forward.1}
  #allocation0 [shape = 'u32[]', space=smem, size = 0x4, offset = 0x4, fixed_abs, tag = 'smem constant byte address 0x4 - core index']
  #allocation1 [shape = 'u32[72,128]{1,0:T(1,128)}', space=vmem, size = 0x9000, scoped, tag = 'internal scratch']
  #allocation2 [shape = 'f32[64,256]{1,0:T(8,128)}', space=vmem, size = 0x10000, scoped, tag = 'scratch operand']
  %s0 = inlined_call_operand.vmem [shape: bf16[64,8], index: 0, kind: input, shape index: {}]
  %s1 = inlined_call_operand.vmem [shape: bf16[8,256], index: 1, kind: input, shape index: {}]
  %s2 = inlined_call_operand.vmem [shape: bf16[64,256], index: 2, kind: input, shape index: {}]
  %s3 = inlined_call_operand.vmem [shape: f32[1,256], index: 3, kind: input, shape index: {}]
  %s4 = inlined_call_operand.hbm [shape: bf16[128,256], index: 4, kind: input, shape index: {}]
  %s5 = inlined_call_operand.vmem [shape: f32[1,256], index: 5, kind: input, shape index: {}]
  %s6 = inlined_call_operand.hbm [shape: bf16[64,128], index: 6, kind: input, shape index: {}]
  %s7 = inlined_call_operand.vmem [shape: f32[1,128], index: 7, kind: input, shape index: {}]
  %s8 = inlined_call_operand.vmem [shape: f32[8,128], index: 8, kind: output, shape index: {}]
  %s9 = sld [smem:[#allocation0]]
  $region50: #{rnn_forward.1} parent=0
    _
  %s11 = ssub.s32 1, %s9
  %s12 = scalar_select 0, %s11, %s9
  $region1: #{rnn_forward.1} parent=0
    #allocation3 [shape = 'u8[65536]{0}', space=vmem, size = 0x10000, scoped, tag = 'input window, operand 4, single buffered']
    #allocation4 [shape = 's32[1]{0}', space=sflag, size = 0x4, scoped, tag = 'scoped memory for rnn_forward.1']
    #allocation5 [shape = 'u8[16384]{0}', space=vmem, size = 0x4000, scoped, tag = 'input window, operand 6, single buffered']
    #allocation6 [shape = 's32[1]{0}', space=sflag, size = 0x4, scoped, tag = 'scoped memory for rnn_forward.1']
    %13 = vsyncpa [#allocation4], 0
    %14 = vsyncpa [#allocation6], 0
    // Predicated region
    $region2: #{rnn_forward.1} parent=1 // pred_check
      _
    $region3: #{rnn_forward.1} parent=1 // pred_check_branch
      %16 = sbr.rel (0) target = $region5
    $region4: #{rnn_forward.1} parent=1 // pred_region
      _
    $region5: #{rnn_forward.1} parent=1 // pred_fallthru
      _
    // Predicated region
    $region6: #{rnn_forward.1} parent=1 // pred_check
      _
    $region7: #{rnn_forward.1} parent=1 // pred_check_branch
      %18 = sbr.rel (0) target = $region9
    $region8: #{rnn_forward.1} parent=1 // pred_region
      _
    $region9: #{rnn_forward.1} parent=1 // pred_fallthru
      _
    // Predicated region
    $region10: #{rnn_forward.1} parent=1 // pred_check
      _
    $region11: #{rnn_forward.1} parent=1 // pred_check_branch
      %20 = sbr.rel (0) target = $region13
    $region12: #{rnn_forward.1} parent=1 // pred_region
      _
    $region13: #{rnn_forward.1} parent=1 // pred_fallthru
      _
    // Predicated region
    $region14: #{rnn_forward.1} parent=1 // pred_check
      _
    $region15: #{rnn_forward.1} parent=1 // pred_check_branch
      %22 = sbr.rel (0) target = $region17
    $region16: #{rnn_forward.1} parent=1 // pred_region
      _
    $region17: #{rnn_forward.1} parent=1 // pred_fallthru
      _
    // Predicated region
    $region18: #{rnn_forward.1} parent=1 // pred_check
      _
    $region19: #{rnn_forward.1} parent=1 // pred_check_branch
      %24 = sbr.rel (0) target = $region21
    $region20: #{rnn_forward.1} parent=1 // pred_region
      %26 = vsyncadd [#allocation4], 0
      %s27 = sshll.u32 %s4, 4
      %s28 = int_to_ptr.hbm [resolvable:$true] %s27
      %s29 = sshll.u32 [#allocation3], 4
      %s30 = int_to_ptr.vmem [resolvable:$true] %s29
      %35 = dma.hbm_to_vmem [thread:$0]  %s28, 2048, %s30, [#allocation4], 128, 128, 8
    $region21: #{rnn_forward.1} parent=1 // pred_fallthru
      _
    // Predicated region
    $region22: #{rnn_forward.1} parent=1 // pred_check
      _
    $region23: #{rnn_forward.1} parent=1 // pred_check_branch
      %37 = sbr.rel (0) target = $region25
    $region24: #{rnn_forward.1} parent=1 // pred_region
      _
    $region25: #{rnn_forward.1} parent=1 // pred_fallthru
      _
    // Predicated region
    $region26: #{rnn_forward.1} parent=1 // pred_check
      _
    $region27: #{rnn_forward.1} parent=1 // pred_check_branch
      %39 = sbr.rel (0) target = $region29
    $region28: #{rnn_forward.1} parent=1 // pred_region
      %41 = vsyncadd [#allocation6], 0
      %s42 = sshll.u32 %s6, 4
      %s43 = int_to_ptr.hbm [resolvable:$true] %s42
      %s44 = sshll.u32 [#allocation5], 4
      %s45 = int_to_ptr.vmem [resolvable:$true] %s44
      %50 = dma.hbm_to_vmem [thread:$0]  %s43, 512, %s45, [#allocation6], 64, 64, 4
    $region29: #{rnn_forward.1} parent=1 // pred_fallthru
      _
    // Predicated region
    $region30: #{rnn_forward.1} parent=1 // pred_check
      _
    $region31: #{rnn_forward.1} parent=1 // pred_check_branch
      %52 = sbr.rel (0) target = $region33
    $region32: #{rnn_forward.1} parent=1 // pred_region
      _
    $region33: #{rnn_forward.1} parent=1 // pred_fallthru
      _
    // Predicated region
    $region34: #{rnn_forward.1} parent=1 // pred_check
      _
    $region35: #{rnn_forward.1} parent=1 // pred_check_branch
      %54 = sbr.rel (0) target = $region37
    $region36: #{rnn_forward.1} parent=1 // pred_region
      %56 = dma.done [#allocation4], 2048
    $region37: #{rnn_forward.1} parent=1 // pred_fallthru
      _
    // Predicated region
    $region38: #{rnn_forward.1} parent=1 // pred_check
      _
    $region39: #{rnn_forward.1} parent=1 // pred_check_branch
      %58 = sbr.rel (0) target = $region41
    $region40: #{rnn_forward.1} parent=1 // pred_region
      %60 = dma.done [#allocation6], 512
    $region41: #{rnn_forward.1} parent=1 // pred_fallthru
      _
    %v62 = vld [vmem:[%s0] sm:$0xf]
    %v63 = vld [vmem:[%s0 + $0x4] sm:$0xf]
    %v64 = vld [vmem:[%s0 + $0x8] sm:$0xf]
    %v65 = vld [vmem:[%s0 + $0xc] sm:$0xf]
    %v66 = vld [vmem:[%s0 + $0x10] sm:$0xf]
    %v67 = vld [vmem:[%s0 + $0x14] sm:$0xf]
    %v68 = vld [vmem:[%s0 + $0x18] sm:$0xf]
    %v69 = vld [vmem:[%s0 + $0x1c] sm:$0xf]
    %v70 = vld [vmem:[%s1] sm:$0xff]
    %v71 = vld [vmem:[%s3] sm:$0x3]
    %v73 = vperm.slane %v71, 0
    %v74 = vperm.slane %v71, 1
    %v85 = vunpack.c.l.b16 %v62
    %v86 = vunpack.c.l.b16 %v63
    %v87 = vunpack.c.l.b16 %v64
    %v88 = vunpack.c.l.b16 %v65
    %v89 = vunpack.c.l.b16 %v66
    %v90 = vunpack.c.l.b16 %v67
    %v91 = vunpack.c.l.b16 %v68
    %v92 = vunpack.c.l.b16 %v69
    %v93 = vpack.c.b16 %v86, %v85
    %v94 = vpack.c.b16 %v88, %v87
    %v95 = vpack.c.b16 %v90, %v89
    %v96 = vpack.c.b16 %v92, %v91
    %v98 = vunpack.c.l.b16 %v70
    %v99 = vunpack.c.h.b16 %v70
    %v100 = vpack.c.b16 %v98, %v98
    %v101 = vpack.c.b16 %v99, %v99
    %vm102 = vcmask 64512
    %v104 = vsel %vm102, %v93, 0
    %v107 = vsel %vm102, %v94, 0
    %v110 = vsel %vm102, %v95, 0
    %v113 = vsel %vm102, %v96, 0
    %vm115 = vcmask 1043456
    %v117 = vsel %vm115, %v100, 0
    %v120 = vsel %vm115, %v101, 0
    %122 = vmatpush.bf16.msra.mxu0 0
    %123 = vmatpush.bf16.msra.mxu0 0
    %124 = vmatpush.bf16.msra.mxu0 0
    %125 = vmatpush.bf16.msra.mxu0 0
    %126 = vmatpush.bf16.msra.mxu0 0
    %127 = vmatpush.bf16.msra.mxu0 0
    %128 = vmatpush.bf16.msra.mxu0 0
    %129 = vmatpush.bf16.msra.mxu0 %v117
    %130 = vmatmul.bf16.gmra.mxu0 %v104
    %v131 = vpop.f32.mrf.mxu0
    %v132 = vadd.f32 %v73, %v131
    %v133 = vpop.f32.mrf.mxu0
    %v134 = vadd.f32 %v73, %v133
    %135 = vmatmul.bf16.gmra.mxu0 %v107
    %v136 = vpop.f32.mrf.mxu0
    %v137 = vadd.f32 %v73, %v136
    %v138 = vpop.f32.mrf.mxu0
    %v139 = vadd.f32 %v73, %v138
    %140 = vmatmul.bf16.gmra.mxu0 %v110
    %v141 = vpop.f32.mrf.mxu0
    %v142 = vadd.f32 %v73, %v141
    %v143 = vpop.f32.mrf.mxu0
    %v144 = vadd.f32 %v73, %v143
    %145 = vmatmul.bf16.gmra.mxu0 %v113
    %v146 = vpop.f32.mrf.mxu0
    %v147 = vadd.f32 %v73, %v146
    %v148 = vpop.f32.mrf.mxu0
    %v149 = vadd.f32 %v73, %v148
    %150 = vdwg.mxu0
    %151 = vmatpush.bf16.msra.mxu0 0
    %152 = vmatpush.bf16.msra.mxu0 0
    %153 = vmatpush.bf16.msra.mxu0 0
    %154 = vmatpush.bf16.msra.mxu0 0
    %155 = vmatpush.bf16.msra.mxu0 0
    %156 = vmatpush.bf16.msra.mxu0 0
    %157 = vmatpush.bf16.msra.mxu0 0
    %158 = vmatpush.bf16.msra.mxu0 %v120
    %159 = vmatmul.bf16.gmra.mxu0 %v104
    %v160 = vpop.f32.mrf.mxu0
    %v161 = vadd.f32 %v74, %v160
    %v162 = vpop.f32.mrf.mxu0
    %v163 = vadd.f32 %v74, %v162
    %164 = vmatmul.bf16.gmra.mxu0 %v107
    %v165 = vpop.f32.mrf.mxu0
    %v166 = vadd.f32 %v74, %v165
    %v167 = vpop.f32.mrf.mxu0
    %v168 = vadd.f32 %v74, %v167
    %169 = vmatmul.bf16.gmra.mxu0 %v110
    %v170 = vpop.f32.mrf.mxu0
    %v171 = vadd.f32 %v74, %v170
    %v172 = vpop.f32.mrf.mxu0
    %v173 = vadd.f32 %v74, %v172
    %174 = vmatmul.bf16.gmra.mxu0 %v113
    %v175 = vpop.f32.mrf.mxu0
    %v176 = vadd.f32 %v74, %v175
    %v177 = vpop.f32.mrf.mxu0
    %v178 = vadd.f32 %v74, %v177
    %179 = vdwg.mxu0
    %180 = vst [vmem:[#allocation2] sm:$0xff] %v132
    %181 = vst [vmem:[#allocation2 + $0x8] sm:$0xff] %v161
    %182 = vst [vmem:[#allocation2 + $0x10] sm:$0xff] %v134
    %183 = vst [vmem:[#allocation2 + $0x18] sm:$0xff] %v163
    %184 = vst [vmem:[#allocation2 + $0x20] sm:$0xff] %v137
    %185 = vst [vmem:[#allocation2 + $0x28] sm:$0xff] %v166
    %186 = vst [vmem:[#allocation2 + $0x30] sm:$0xff] %v139
    %187 = vst [vmem:[#allocation2 + $0x38] sm:$0xff] %v168
    %188 = vst [vmem:[#allocation2 + $0x40] sm:$0xff] %v142
    %189 = vst [vmem:[#allocation2 + $0x48] sm:$0xff] %v171
    %190 = vst [vmem:[#allocation2 + $0x50] sm:$0xff] %v144
    %191 = vst [vmem:[#allocation2 + $0x58] sm:$0xff] %v173
    %192 = vst [vmem:[#allocation2 + $0x60] sm:$0xff] %v147
    %193 = vst [vmem:[#allocation2 + $0x68] sm:$0xff] %v176
    %194 = vst [vmem:[#allocation2 + $0x70] sm:$0xff] %v149
    %195 = vst [vmem:[#allocation2 + $0x78] sm:$0xff] %v178
    %v196 = vld [vmem:[%s2] sm:$0xff]
    %v197 = vld [vmem:[%s2 + $0x8] sm:$0xff]
    %v198 = vld [vmem:[%s2 + $0x10] sm:$0xff]
    %v199 = vld [vmem:[%s2 + $0x18] sm:$0xff]
    %v200 = vld [vmem:[%s2 + $0x20] sm:$0xff]
    %v201 = vld [vmem:[%s2 + $0x28] sm:$0xff]
    %v202 = vld [vmem:[%s2 + $0x30] sm:$0xff]
    %v203 = vld [vmem:[%s2 + $0x38] sm:$0xff]
    %v204 = vld [vmem:[#allocation3] sm:$0xff]
    %v205 = vld [vmem:[#allocation3 + $0x8] sm:$0xff]
    %v206 = vld [vmem:[#allocation3 + $0x10] sm:$0xff]
    %v207 = vld [vmem:[#allocation3 + $0x18] sm:$0xff]
    %v208 = vld [vmem:[#allocation3 + $0x20] sm:$0xff]
    %v209 = vld [vmem:[#allocation3 + $0x28] sm:$0xff]
    %v210 = vld [vmem:[#allocation3 + $0x30] sm:$0xff]
    %v211 = vld [vmem:[#allocation3 + $0x38] sm:$0xff]
    %v212 = vld [vmem:[#allocation3 + $0x40] sm:$0xff]
    %v213 = vld [vmem:[#allocation3 + $0x48] sm:$0xff]
    %v214 = vld [vmem:[#allocation3 + $0x50] sm:$0xff]
    %v215 = vld [vmem:[#allocation3 + $0x58] sm:$0xff]
    %v216 = vld [vmem:[#allocation3 + $0x60] sm:$0xff]
    %v217 = vld [vmem:[#allocation3 + $0x68] sm:$0xff]
    %v218 = vld [vmem:[#allocation3 + $0x70] sm:$0xff]
    %v219 = vld [vmem:[#allocation3 + $0x78] sm:$0xff]
    %v220 = vld [vmem:[%s5] sm:$0x3]
    %v222 = vperm.slane %v220, 0
    %v223 = vperm.slane %v220, 1
    %v226 = vld [vmem:[#allocation2] sm:$0xff]
    %v227 = vld [vmem:[#allocation2 + $0x8] sm:$0xff]
    %v236 = vunpack.c.l.b16 %v196
    %v237 = vunpack.c.h.b16 %v196
    %v238 = vunpack.c.l.b16 %v197
    %v239 = vunpack.c.h.b16 %v197
    %v240 = vunpack.c.l.b16 %v198
    %v241 = vunpack.c.h.b16 %v198
    %v242 = vunpack.c.l.b16 %v199
    %v243 = vunpack.c.h.b16 %v199
    %v244 = vunpack.c.l.b16 %v200
    %v245 = vunpack.c.h.b16 %v200
    %v246 = vunpack.c.l.b16 %v201
    %v247 = vunpack.c.h.b16 %v201
    %v248 = vunpack.c.l.b16 %v202
    %v249 = vunpack.c.h.b16 %v202
    %v250 = vunpack.c.l.b16 %v203
    %v251 = vunpack.c.h.b16 %v203
    %v252 = vpack.c.b16 %v238, %v236
    %v253 = vpack.c.b16 %v239, %v237
    %v254 = vpack.c.b16 %v242, %v240
    %v255 = vpack.c.b16 %v243, %v241
    %v256 = vpack.c.b16 %v246, %v244
    %v257 = vpack.c.b16 %v247, %v245
    %v258 = vpack.c.b16 %v250, %v248
    %v259 = vpack.c.b16 %v251, %v249
    %vm268 = vcmask 523264
    %v270 = vsel %vm268, 0, 0
    %272 = vmatpush.bf16.msra.mxu0 0
    %273 = vmatpush.bf16.msra.mxu0 0
    %274 = vmatpush.bf16.msra.mxu0 0
    %275 = vmatpush.bf16.msra.mxu0 0
    %276 = vmatpush.bf16.msra.mxu0 %v258
    %277 = vmatpush.bf16.msra.mxu0 %v256
    %278 = vmatpush.bf16.msra.mxu0 %v254
    %279 = vmatpush.bf16.msra.mxu0 %v252
    %280 = vmatmul.bf16.gmra.mxu0 %v270
    %v281 = vpop.f32.mrf.mxu0
    %v282 = vadd.f32 0.0, %v281
    %v283 = vpop.f32.mrf.mxu0
    %284 = vdwg.mxu0
    %285 = vmatpush.bf16.msra.mxu0 0
    %286 = vmatpush.bf16.msra.mxu0 0
    %287 = vmatpush.bf16.msra.mxu0 0
    %288 = vmatpush.bf16.msra.mxu0 0
    %289 = vmatpush.bf16.msra.mxu0 %v259
    %290 = vmatpush.bf16.msra.mxu0 %v257
    %291 = vmatpush.bf16.msra.mxu0 %v255
    %292 = vmatpush.bf16.msra.mxu0 %v253
    %293 = vmatmul.bf16.gmra.mxu0 %v270
    %v294 = vpop.f32.mrf.mxu0
    %v295 = vadd.f32 0.0, %v294
    %v296 = vpop.f32.mrf.mxu0
    %297 = vdwg.mxu0
    %v298 = vadd.f32 %v226, %v282
    %v299 = vadd.f32 %v227, %v295
    %v300 = vxor.u32 %v298, 2147483648
    %v301 = vmul.f32 %v300, 1.442695
    %v302 = vpow.pop %v301
    %v303 = vadd.f32 %v302, 1.0
    %v304 = vrcp.pop %v303
    %v305 = vmul.f32 %v303, %v304
    %v306 = vsub.f32 1.0, %v305
    %v307 = vmul.f32 %v304, %v306
    %v308 = vadd.f32 %v304, %v307
    %vm309 = vweird.f32 %v303
    %vm310 = vweird.f32 %v304
    %vm311 = vmor %vm309, %vm310
    %v312 = vsel %vm311, %v304, %v308
    %v313 = vand.u32 2147483647, %v303
    %vm314 = vcmp.eq.f32.partialorder %v313, 8.507059e+37
    %v315 = vand.u32 %v303, 2147483648
    %v316 = vor.u32 1.1754944e-38, %v315
    %v317 = vsel %vm314, %v316, %v312
    %v318 = vmul.f32 1.0, %v317
    %v319 = vtanh.pop %v299
    %v320 = vxor.u32 %v299, 2147483648
    %v321 = vmul.f32 %v320, 1.442695
    %v322 = vpow.pop %v321
    %v323 = vadd.f32 %v322, 1.0
    %v324 = vrcp.pop %v323
    %v325 = vmul.f32 %v323, %v324
    %v326 = vsub.f32 1.0, %v325
    %v327 = vmul.f32 %v324, %v326
    %v328 = vadd.f32 %v324, %v327
    %vm329 = vweird.f32 %v323
    %vm330 = vweird.f32 %v324
    %vm331 = vmor %vm329, %vm330
    %v332 = vsel %vm331, %v324, %v328
    %v333 = vand.u32 2147483647, %v323
    %vm334 = vcmp.eq.f32.partialorder %v333, 8.507059e+37
    %v335 = vand.u32 %v323, 2147483648
    %v336 = vor.u32 1.1754944e-38, %v335
    %v337 = vsel %vm334, %v336, %v332
    %v338 = vmul.f32 1.0, %v337
    %v339 = vmul.f32 %v318, 0.0
    %v340 = vmul.f32 %v318, %v319
    %342 = vrot.lane.b32.xlu0 %v340, 64
    %v343 = vpop.permute.xlu0 %342
    %v345 = vadd.f32 %v339, %v343
    %v346 = vtanh.pop %v345
    %v347 = vmul.f32 %v338, %v346
    %v348 = vld [vmem:[#allocation2 + $0x10] sm:$0xff]
    %v349 = vld [vmem:[#allocation2 + $0x18] sm:$0xff]
    %v350 = vpack.c.bf16 %v347, %v347
    %352 = vrot.lane.b32.xlu0 %v350, 64
    %v353 = vpop.permute.xlu0 %352
    %v355 = vsel %vm268, %v353, 0
    %357 = vmatpush.bf16.msra.mxu0 0
    %358 = vmatpush.bf16.msra.mxu0 0
    %359 = vmatpush.bf16.msra.mxu0 0
    %360 = vmatpush.bf16.msra.mxu0 0
    %361 = vmatpush.bf16.msra.mxu0 %v258
    %362 = vmatpush.bf16.msra.mxu0 %v256
    %363 = vmatpush.bf16.msra.mxu0 %v254
    %364 = vmatpush.bf16.msra.mxu0 %v252
    %365 = vmatmul.bf16.gmra.mxu0 %v355
    %v366 = vpop.f32.mrf.mxu0
    %v367 = vadd.f32 0.0, %v366
    %v368 = vpop.f32.mrf.mxu0
    %369 = vdwg.mxu0
    %370 = vmatpush.bf16.msra.mxu0 0
    %371 = vmatpush.bf16.msra.mxu0 0
    %372 = vmatpush.bf16.msra.mxu0 0
    %373 = vmatpush.bf16.msra.mxu0 0
    %374 = vmatpush.bf16.msra.mxu0 %v259
    %375 = vmatpush.bf16.msra.mxu0 %v257
    %376 = vmatpush.bf16.msra.mxu0 %v255
    %377 = vmatpush.bf16.msra.mxu0 %v253
    %378 = vmatmul.bf16.gmra.mxu0 %v355
    %v379 = vpop.f32.mrf.mxu0
    %v380 = vadd.f32 0.0, %v379
    %v381 = vpop.f32.mrf.mxu0
    %382 = vdwg.mxu0
    %v383 = vadd.f32 %v348, %v367
    %v384 = vadd.f32 %v349, %v380
    %v385 = vxor.u32 %v383, 2147483648
    %v386 = vmul.f32 %v385, 1.442695
    %v387 = vpow.pop %v386
    %v388 = vadd.f32 %v387, 1.0
    %v389 = vrcp.pop %v388
    %v390 = vmul.f32 %v388, %v389
    %v391 = vsub.f32 1.0, %v390
    %v392 = vmul.f32 %v389, %v391
    %v393 = vadd.f32 %v389, %v392
    %vm394 = vweird.f32 %v388
    %vm395 = vweird.f32 %v389
    %vm396 = vmor %vm394, %vm395
    %v397 = vsel %vm396, %v389, %v393
    %v398 = vand.u32 2147483647, %v388
    %vm399 = vcmp.eq.f32.partialorder %v398, 8.507059e+37
    %v400 = vand.u32 %v388, 2147483648
    %v401 = vor.u32 1.1754944e-38, %v400
    %v402 = vsel %vm399, %v401, %v397
    %v403 = vmul.f32 1.0, %v402
    %v404 = vtanh.pop %v384
    %v405 = vxor.u32 %v384, 2147483648
    %v406 = vmul.f32 %v405, 1.442695
    %v407 = vpow.pop %v406
    %v408 = vadd.f32 %v407, 1.0
    %v409 = vrcp.pop %v408
    %v410 = vmul.f32 %v408, %v409
    %v411 = vsub.f32 1.0, %v410
    %v412 = vmul.f32 %v409, %v411
    %v413 = vadd.f32 %v409, %v412
    %vm414 = vweird.f32 %v408
    %vm415 = vweird.f32 %v409
    %vm416 = vmor %vm414, %vm415
    %v417 = vsel %vm416, %v409, %v413
    %v418 = vand.u32 2147483647, %v408
    %vm419 = vcmp.eq.f32.partialorder %v418, 8.507059e+37
    %v420 = vand.u32 %v408, 2147483648
    %v421 = vor.u32 1.1754944e-38, %v420
    %v422 = vsel %vm419, %v421, %v417
    %v423 = vmul.f32 1.0, %v422
    %v424 = vmul.f32 %v403, %v345
    %v425 = vmul.f32 %v403, %v404
    %427 = vrot.lane.b32.xlu0 %v425, 64
    %v428 = vpop.permute.xlu0 %427
    %v430 = vadd.f32 %v424, %v428
    %v431 = vtanh.pop %v430
    %v432 = vmul.f32 %v423, %v431
    %434 = vrot.lane.b32.xlu0 %v347, 64
    %v435 = vpop.permute.xlu0 %434
    %v437 = vsel %vm268, %v435, 0.0
    %v438 = vpack.c.bf16 %v437, %v437
    %v455 = vunpack.c.l.b16 %v204
    %v456 = vunpack.c.h.b16 %v204
    %v457 = vunpack.c.l.b16 %v205
    %v458 = vunpack.c.h.b16 %v205
    %v459 = vunpack.c.l.b16 %v206
    %v460 = vunpack.c.h.b16 %v206
    %v461 = vunpack.c.l.b16 %v207
    %v462 = vunpack.c.h.b16 %v207
    %v463 = vunpack.c.l.b16 %v208
    %v464 = vunpack.c.h.b16 %v208
    %v465 = vunpack.c.l.b16 %v209
    %v466 = vunpack.c.h.b16 %v209
    %v467 = vunpack.c.l.b16 %v210
    %v468 = vunpack.c.h.b16 %v210
    %v469 = vunpack.c.l.b16 %v211
    %v470 = vunpack.c.h.b16 %v211
    %v471 = vunpack.c.l.b16 %v212
    %v472 = vunpack.c.h.b16 %v212
    %v473 = vunpack.c.l.b16 %v213
    %v474 = vunpack.c.h.b16 %v213
    %v475 = vunpack.c.l.b16 %v214
    %v476 = vunpack.c.h.b16 %v214
    %v477 = vunpack.c.l.b16 %v215
    %v478 = vunpack.c.h.b16 %v215
    %v479 = vunpack.c.l.b16 %v216
    %v480 = vunpack.c.h.b16 %v216
    %v481 = vunpack.c.l.b16 %v217
    %v482 = vunpack.c.h.b16 %v217
    %v483 = vunpack.c.l.b16 %v218
    %v484 = vunpack.c.h.b16 %v218
    %v485 = vunpack.c.l.b16 %v219
    %v486 = vunpack.c.h.b16 %v219
    %v487 = vpack.c.b16 %v457, %v455
    %v488 = vpack.c.b16 %v458, %v456
    %v489 = vpack.c.b16 %v461, %v459
    %v490 = vpack.c.b16 %v462, %v460
    %v491 = vpack.c.b16 %v465, %v463
    %v492 = vpack.c.b16 %v466, %v464
    %v493 = vpack.c.b16 %v469, %v467
    %v494 = vpack.c.b16 %v470, %v468
    %v495 = vpack.c.b16 %v473, %v471
    %v496 = vpack.c.b16 %v474, %v472
    %v497 = vpack.c.b16 %v477, %v475
    %v498 = vpack.c.b16 %v478, %v476
    %v499 = vpack.c.b16 %v481, %v479
    %v500 = vpack.c.b16 %v482, %v480
    %v501 = vpack.c.b16 %v485, %v483
    %v502 = vpack.c.b16 %v486, %v484
    %519 = vmatpush.bf16.msra.mxu0 %v501
    %520 = vmatpush.bf16.msra.mxu0 %v499
    %521 = vmatpush.bf16.msra.mxu0 %v497
    %522 = vmatpush.bf16.msra.mxu0 %v495
    %523 = vmatpush.bf16.msra.mxu0 %v493
    %524 = vmatpush.bf16.msra.mxu0 %v491
    %525 = vmatpush.bf16.msra.mxu0 %v489
    %526 = vmatpush.bf16.msra.mxu0 %v487
    %527 = vmatmul.bf16.gmra.mxu0 %v438
    %v528 = vpop.f32.mrf.mxu0
    %v529 = vadd.f32 %v222, %v528
    %v530 = vpop.f32.mrf.mxu0
    %531 = vdwg.mxu0
    %532 = vmatpush.bf16.msra.mxu0 %v502
    %533 = vmatpush.bf16.msra.mxu0 %v500
    %534 = vmatpush.bf16.msra.mxu0 %v498
    %535 = vmatpush.bf16.msra.mxu0 %v496
    %536 = vmatpush.bf16.msra.mxu0 %v494
    %537 = vmatpush.bf16.msra.mxu0 %v492
    %538 = vmatpush.bf16.msra.mxu0 %v490
    %539 = vmatpush.bf16.msra.mxu0 %v488
    %540 = vmatmul.bf16.gmra.mxu0 %v438
    %v541 = vpop.f32.mrf.mxu0
    %v542 = vadd.f32 %v223, %v541
    %v543 = vpop.f32.mrf.mxu0
    %544 = vdwg.mxu0
    %v545 = vxor.u32 %v529, 2147483648
    %v546 = vmul.f32 %v545, 1.442695
    %v547 = vpow.pop %v546
    %v548 = vadd.f32 %v547, 1.0
    %v549 = vrcp.pop %v548
    %v550 = vmul.f32 %v548, %v549
    %v551 = vsub.f32 1.0, %v550
    %v552 = vmul.f32 %v549, %v551
    %v553 = vadd.f32 %v549, %v552
    %vm554 = vweird.f32 %v548
    %vm555 = vweird.f32 %v549
    %vm556 = vmor %vm554, %vm555
    %v557 = vsel %vm556, %v549, %v553
    %v558 = vand.u32 2147483647, %v548
    %vm559 = vcmp.eq.f32.partialorder %v558, 8.507059e+37
    %v560 = vand.u32 %v548, 2147483648
    %v561 = vor.u32 1.1754944e-38, %v560
    %v562 = vsel %vm559, %v561, %v557
    %v563 = vmul.f32 1.0, %v562
    %v564 = vtanh.pop %v542
    %v565 = vxor.u32 %v542, 2147483648
    %v566 = vmul.f32 %v565, 1.442695
    %v567 = vpow.pop %v566
    %v568 = vadd.f32 %v567, 1.0
    %v569 = vrcp.pop %v568
    %v570 = vmul.f32 %v568, %v569
    %v571 = vsub.f32 1.0, %v570
    %v572 = vmul.f32 %v569, %v571
    %v573 = vadd.f32 %v569, %v572
    %vm574 = vweird.f32 %v568
    %vm575 = vweird.f32 %v569
    %vm576 = vmor %vm574, %vm575
    %v577 = vsel %vm576, %v569, %v573
    %v578 = vand.u32 2147483647, %v568
    %vm579 = vcmp.eq.f32.partialorder %v578, 8.507059e+37
    %v580 = vand.u32 %v568, 2147483648
    %v581 = vor.u32 1.1754944e-38, %v580
    %v582 = vsel %vm579, %v581, %v577
    %v583 = vmul.f32 1.0, %v582
    %v584 = vmul.f32 %v563, 0.0
    %v585 = vmul.f32 %v563, %v564
    %587 = vrot.lane.b32.xlu0 %v585, 64
    %v588 = vpop.permute.xlu0 %587
    %v590 = vadd.f32 %v584, %v588
    %v591 = vtanh.pop %v590
    %v592 = vmul.f32 %v583, %v591
    %v593 = vld [vmem:[#allocation2 + $0x20] sm:$0xff]
    %v594 = vld [vmem:[#allocation2 + $0x28] sm:$0xff]
    %v595 = vpack.c.bf16 %v432, %v432
    %597 = vrot.lane.b32.xlu0 %v595, 64
    %v598 = vpop.permute.xlu0 %597
    %v600 = vsel %vm268, %v598, 0
    %602 = vmatpush.bf16.msra.mxu0 0
    %603 = vmatpush.bf16.msra.mxu0 0
    %604 = vmatpush.bf16.msra.mxu0 0
    %605 = vmatpush.bf16.msra.mxu0 0
    %606 = vmatpush.bf16.msra.mxu0 %v258
    %607 = vmatpush.bf16.msra.mxu0 %v256
    %608 = vmatpush.bf16.msra.mxu0 %v254
    %609 = vmatpush.bf16.msra.mxu0 %v252
    %610 = vmatmul.bf16.gmra.mxu0 %v600
    %v611 = vpop.f32.mrf.mxu0
    %v612 = vadd.f32 0.0, %v611
    %v613 = vpop.f32.mrf.mxu0
    %614 = vdwg.mxu0
    %615 = vmatpush.bf16.msra.mxu0 0
    %616 = vmatpush.bf16.msra.mxu0 0
    %617 = vmatpush.bf16.msra.mxu0 0
    %618 = vmatpush.bf16.msra.mxu0 0
    %619 = vmatpush.bf16.msra.mxu0 %v259
    %620 = vmatpush.bf16.msra.mxu0 %v257
    %621 = vmatpush.bf16.msra.mxu0 %v255
    %622 = vmatpush.bf16.msra.mxu0 %v253
    %623 = vmatmul.bf16.gmra.mxu0 %v600
    %v624 = vpop.f32.mrf.mxu0
    %v625 = vadd.f32 0.0, %v624
    %v626 = vpop.f32.mrf.mxu0
    %627 = vdwg.mxu0
    %v628 = vadd.f32 %v593, %v612
    %v629 = vadd.f32 %v594, %v625
    %v630 = vxor.u32 %v628, 2147483648
    %v631 = vmul.f32 %v630, 1.442695
    %v632 = vpow.pop %v631
    %v633 = vadd.f32 %v632, 1.0
    %v634 = vrcp.pop %v633
    %v635 = vmul.f32 %v633, %v634
    %v636 = vsub.f32 1.0, %v635
    %v637 = vmul.f32 %v634, %v636
    %v638 = vadd.f32 %v634, %v637
    %vm639 = vweird.f32 %v633
    %vm640 = vweird.f32 %v634
    %vm641 = vmor %vm639, %vm640
    %v642 = vsel %vm641, %v634, %v638
    %v643 = vand.u32 2147483647, %v633
    %vm644 = vcmp.eq.f32.partialorder %v643, 8.507059e+37
    %v645 = vand.u32 %v633, 2147483648
    %v646 = vor.u32 1.1754944e-38, %v645
    %v647 = vsel %vm644, %v646, %v642
    %v648 = vmul.f32 1.0, %v647
    %v649 = vtanh.pop %v629
    %v650 = vxor.u32 %v629, 2147483648
    %v651 = vmul.f32 %v650, 1.442695
    %v652 = vpow.pop %v651
    %v653 = vadd.f32 %v652, 1.0
    %v654 = vrcp.pop %v653
    %v655 = vmul.f32 %v653, %v654
    %v656 = vsub.f32 1.0, %v655
    %v657 = vmul.f32 %v654, %v656
    %v658 = vadd.f32 %v654, %v657
    %vm659 = vweird.f32 %v653
    %vm660 = vweird.f32 %v654
    %vm661 = vmor %vm659, %vm660
    %v662 = vsel %vm661, %v654, %v658
    %v663 = vand.u32 2147483647, %v653
    %vm664 = vcmp.eq.f32.partialorder %v663, 8.507059e+37
    %v665 = vand.u32 %v653, 2147483648
    %v666 = vor.u32 1.1754944e-38, %v665
    %v667 = vsel %vm664, %v666, %v662
    %v668 = vmul.f32 1.0, %v667
    %v669 = vmul.f32 %v648, %v430
    %v670 = vmul.f32 %v648, %v649
    %672 = vrot.lane.b32.xlu0 %v670, 64
    %v673 = vpop.permute.xlu0 %672
    %v675 = vadd.f32 %v669, %v673
    %v676 = vtanh.pop %v675
    %v677 = vmul.f32 %v668, %v676
    %679 = vrot.lane.b32.xlu0 %v432, 64
    %v680 = vpop.permute.xlu0 %679
    %v682 = vsel %vm268, %v680, %v592
    %v683 = vpack.c.bf16 %v682, %v682
    %684 = vmatpush.bf16.msra.mxu0 %v501
    %685 = vmatpush.bf16.msra.mxu0 %v499
    %686 = vmatpush.bf16.msra.mxu0 %v497
    %687 = vmatpush.bf16.msra.mxu0 %v495
    %688 = vmatpush.bf16.msra.mxu0 %v493
    %689 = vmatpush.bf16.msra.mxu0 %v491
    %690 = vmatpush.bf16.msra.mxu0 %v489
    %691 = vmatpush.bf16.msra.mxu0 %v487
    %692 = vmatmul.bf16.gmra.mxu0 %v683
    %v693 = vpop.f32.mrf.mxu0
    %v694 = vadd.f32 %v222, %v693
    %v695 = vpop.f32.mrf.mxu0
    %696 = vdwg.mxu0
    %697 = vmatpush.bf16.msra.mxu0 %v502
    %698 = vmatpush.bf16.msra.mxu0 %v500
    %699 = vmatpush.bf16.msra.mxu0 %v498
    %700 = vmatpush.bf16.msra.mxu0 %v496
    %701 = vmatpush.bf16.msra.mxu0 %v494
    %702 = vmatpush.bf16.msra.mxu0 %v492
    %703 = vmatpush.bf16.msra.mxu0 %v490
    %704 = vmatpush.bf16.msra.mxu0 %v488
    %705 = vmatmul.bf16.gmra.mxu0 %v683
    %v706 = vpop.f32.mrf.mxu0
    %v707 = vadd.f32 %v223, %v706
    %v708 = vpop.f32.mrf.mxu0
    %709 = vdwg.mxu0
    %v710 = vxor.u32 %v694, 2147483648
    %v711 = vmul.f32 %v710, 1.442695
    %v712 = vpow.pop %v711
    %v713 = vadd.f32 %v712, 1.0
    %v714 = vrcp.pop %v713
    %v715 = vmul.f32 %v713, %v714
    %v716 = vsub.f32 1.0, %v715
    %v717 = vmul.f32 %v714, %v716
    %v718 = vadd.f32 %v714, %v717
    %vm719 = vweird.f32 %v713
    %vm720 = vweird.f32 %v714
    %vm721 = vmor %vm719, %vm720
    %v722 = vsel %vm721, %v714, %v718
    %v723 = vand.u32 2147483647, %v713
    %vm724 = vcmp.eq.f32.partialorder %v723, 8.507059e+37
    %v725 = vand.u32 %v713, 2147483648
    %v726 = vor.u32 1.1754944e-38, %v725
    %v727 = vsel %vm724, %v726, %v722
    %v728 = vmul.f32 1.0, %v727
    %v729 = vtanh.pop %v707
    %v730 = vxor.u32 %v707, 2147483648
    %v731 = vmul.f32 %v730, 1.442695
    %v732 = vpow.pop %v731
    %v733 = vadd.f32 %v732, 1.0
    %v734 = vrcp.pop %v733
    %v735 = vmul.f32 %v733, %v734
    %v736 = vsub.f32 1.0, %v735
    %v737 = vmul.f32 %v734, %v736
    %v738 = vadd.f32 %v734, %v737
    %vm739 = vweird.f32 %v733
    %vm740 = vweird.f32 %v734
    %vm741 = vmor %vm739, %vm740
    %v742 = vsel %vm741, %v734, %v738
    %v743 = vand.u32 2147483647, %v733
    %vm744 = vcmp.eq.f32.partialorder %v743, 8.507059e+37
    %v745 = vand.u32 %v733, 2147483648
    %v746 = vor.u32 1.1754944e-38, %v745
    %v747 = vsel %vm744, %v746, %v742
    %v748 = vmul.f32 1.0, %v747
    %v749 = vmul.f32 %v728, %v590
    %v750 = vmul.f32 %v728, %v729
    %752 = vrot.lane.b32.xlu0 %v750, 64
    %v753 = vpop.permute.xlu0 %752
    %v755 = vadd.f32 %v749, %v753
    %v756 = vtanh.pop %v755
    %v757 = vmul.f32 %v748, %v756
    %v758 = vld [vmem:[#allocation2 + $0x30] sm:$0xff]
    %v759 = vld [vmem:[#allocation2 + $0x38] sm:$0xff]
    %v760 = vpack.c.bf16 %v677, %v677
    %762 = vrot.lane.b32.xlu0 %v760, 64
    %v763 = vpop.permute.xlu0 %762
    %v765 = vsel %vm268, %v763, 0
    %767 = vmatpush.bf16.msra.mxu0 0
    %768 = vmatpush.bf16.msra.mxu0 0
    %769 = vmatpush.bf16.msra.mxu0 0
    %770 = vmatpush.bf16.msra.mxu0 0
    %771 = vmatpush.bf16.msra.mxu0 %v258
    %772 = vmatpush.bf16.msra.mxu0 %v256
    %773 = vmatpush.bf16.msra.mxu0 %v254
    %774 = vmatpush.bf16.msra.mxu0 %v252
    %775 = vmatmul.bf16.gmra.mxu0 %v765
    %v776 = vpop.f32.mrf.mxu0
    %v777 = vadd.f32 0.0, %v776
    %v778 = vpop.f32.mrf.mxu0
    %779 = vdwg.mxu0
    %780 = vmatpush.bf16.msra.mxu0 0
    %781 = vmatpush.bf16.msra.mxu0 0
    %782 = vmatpush.bf16.msra.mxu0 0
    %783 = vmatpush.bf16.msra.mxu0 0
    %784 = vmatpush.bf16.msra.mxu0 %v259
    %785 = vmatpush.bf16.msra.mxu0 %v257
    %786 = vmatpush.bf16.msra.mxu0 %v255
    %787 = vmatpush.bf16.msra.mxu0 %v253
    %788 = vmatmul.bf16.gmra.mxu0 %v765
    %v789 = vpop.f32.mrf.mxu0
    %v790 = vadd.f32 0.0, %v789
    %v791 = vpop.f32.mrf.mxu0
    %792 = vdwg.mxu0
    %v793 = vadd.f32 %v758, %v777
    %v794 = vadd.f32 %v759, %v790
    %v795 = vxor.u32 %v793, 2147483648
    %v796 = vmul.f32 %v795, 1.442695
    %v797 = vpow.pop %v796
    %v798 = vadd.f32 %v797, 1.0
    %v799 = vrcp.pop %v798
    %v800 = vmul.f32 %v798, %v799
    %v801 = vsub.f32 1.0, %v800
    %v802 = vmul.f32 %v799, %v801
    %v803 = vadd.f32 %v799, %v802
    %vm804 = vweird.f32 %v798
    %vm805 = vweird.f32 %v799
    %vm806 = vmor %vm804, %vm805
    %v807 = vsel %vm806, %v799, %v803
    %v808 = vand.u32 2147483647, %v798
    %vm809 = vcmp.eq.f32.partialorder %v808, 8.507059e+37
    %v810 = vand.u32 %v798, 2147483648
    %v811 = vor.u32 1.1754944e-38, %v810
    %v812 = vsel %vm809, %v811, %v807
    %v813 = vmul.f32 1.0, %v812
    %v814 = vtanh.pop %v794
    %v815 = vxor.u32 %v794, 2147483648
    %v816 = vmul.f32 %v815, 1.442695
    %v817 = vpow.pop %v816
    %v818 = vadd.f32 %v817, 1.0
    %v819 = vrcp.pop %v818
    %v820 = vmul.f32 %v818, %v819
    %v821 = vsub.f32 1.0, %v820
    %v822 = vmul.f32 %v819, %v821
    %v823 = vadd.f32 %v819, %v822
    %vm824 = vweird.f32 %v818
    %vm825 = vweird.f32 %v819
    %vm826 = vmor %vm824, %vm825
    %v827 = vsel %vm826, %v819, %v823
    %v828 = vand.u32 2147483647, %v818
    %vm829 = vcmp.eq.f32.partialorder %v828, 8.507059e+37
    %v830 = vand.u32 %v818, 2147483648
    %v831 = vor.u32 1.1754944e-38, %v830
    %v832 = vsel %vm829, %v831, %v827
    %v833 = vmul.f32 1.0, %v832
    %v834 = vmul.f32 %v813, %v675
    %v835 = vmul.f32 %v813, %v814
    %837 = vrot.lane.b32.xlu0 %v835, 64
    %v838 = vpop.permute.xlu0 %837
    %v840 = vadd.f32 %v834, %v838
    %v841 = vtanh.pop %v840
    %v842 = vmul.f32 %v833, %v841
    %844 = vrot.lane.b32.xlu0 %v677, 64
    %v845 = vpop.permute.xlu0 %844
    %v847 = vsel %vm268, %v845, %v757
    %v848 = vpack.c.bf16 %v847, %v847
    %849 = vmatpush.bf16.msra.mxu0 %v501
    %850 = vmatpush.bf16.msra.mxu0 %v499
    %851 = vmatpush.bf16.msra.mxu0 %v497
    %852 = vmatpush.bf16.msra.mxu0 %v495
    %853 = vmatpush.bf16.msra.mxu0 %v493
    %854 = vmatpush.bf16.msra.mxu0 %v491
    %855 = vmatpush.bf16.msra.mxu0 %v489
    %856 = vmatpush.bf16.msra.mxu0 %v487
    %857 = vmatmul.bf16.gmra.mxu0 %v848
    %v858 = vpop.f32.mrf.mxu0
    %v859 = vadd.f32 %v222, %v858
    %v860 = vpop.f32.mrf.mxu0
    %861 = vdwg.mxu0
    %862 = vmatpush.bf16.msra.mxu0 %v502
    %863 = vmatpush.bf16.msra.mxu0 %v500
    %864 = vmatpush.bf16.msra.mxu0 %v498
    %865 = vmatpush.bf16.msra.mxu0 %v496
    %866 = vmatpush.bf16.msra.mxu0 %v494
    %867 = vmatpush.bf16.msra.mxu0 %v492
    %868 = vmatpush.bf16.msra.mxu0 %v490
    %869 = vmatpush.bf16.msra.mxu0 %v488
    %870 = vmatmul.bf16.gmra.mxu0 %v848
    %v871 = vpop.f32.mrf.mxu0
    %v872 = vadd.f32 %v223, %v871
    %v873 = vpop.f32.mrf.mxu0
    %874 = vdwg.mxu0
    %v875 = vxor.u32 %v859, 2147483648
    %v876 = vmul.f32 %v875, 1.442695
    %v877 = vpow.pop %v876
    %v878 = vadd.f32 %v877, 1.0
    %v879 = vrcp.pop %v878
    %v880 = vmul.f32 %v878, %v879
    %v881 = vsub.f32 1.0, %v880
    %v882 = vmul.f32 %v879, %v881
    %v883 = vadd.f32 %v879, %v882
    %vm884 = vweird.f32 %v878
    %vm885 = vweird.f32 %v879
    %vm886 = vmor %vm884, %vm885
    %v887 = vsel %vm886, %v879, %v883
    %v888 = vand.u32 2147483647, %v878
    %vm889 = vcmp.eq.f32.partialorder %v888, 8.507059e+37
    %v890 = vand.u32 %v878, 2147483648
    %v891 = vor.u32 1.1754944e-38, %v890
    %v892 = vsel %vm889, %v891, %v887
    %v893 = vmul.f32 1.0, %v892
    %v894 = vtanh.pop %v872
    %v895 = vxor.u32 %v872, 2147483648
    %v896 = vmul.f32 %v895, 1.442695
    %v897 = vpow.pop %v896
    %v898 = vadd.f32 %v897, 1.0
    %v899 = vrcp.pop %v898
    %v900 = vmul.f32 %v898, %v899
    %v901 = vsub.f32 1.0, %v900
    %v902 = vmul.f32 %v899, %v901
    %v903 = vadd.f32 %v899, %v902
    %vm904 = vweird.f32 %v898
    %vm905 = vweird.f32 %v899
    %vm906 = vmor %vm904, %vm905
    %v907 = vsel %vm906, %v899, %v903
    %v908 = vand.u32 2147483647, %v898
    %vm909 = vcmp.eq.f32.partialorder %v908, 8.507059e+37
    %v910 = vand.u32 %v898, 2147483648
    %v911 = vor.u32 1.1754944e-38, %v910
    %v912 = vsel %vm909, %v911, %v907
    %v913 = vmul.f32 1.0, %v912
    %v914 = vmul.f32 %v893, %v755
    %v915 = vmul.f32 %v893, %v894
    %917 = vrot.lane.b32.xlu0 %v915, 64
    %v918 = vpop.permute.xlu0 %917
    %v920 = vadd.f32 %v914, %v918
    %v921 = vtanh.pop %v920
    %v922 = vmul.f32 %v913, %v921
    %v923 = vld [vmem:[#allocation2 + $0x40] sm:$0xff]
    %v924 = vld [vmem:[#allocation2 + $0x48] sm:$0xff]
    %v925 = vpack.c.bf16 %v842, %v842
    %927 = vrot.lane.b32.xlu0 %v925, 64
    %v928 = vpop.permute.xlu0 %927
    %v930 = vsel %vm268, %v928, 0
    %932 = vmatpush.bf16.msra.mxu0 0
    %933 = vmatpush.bf16.msra.mxu0 0
    %934 = vmatpush.bf16.msra.mxu0 0
    %935 = vmatpush.bf16.msra.mxu0 0
    %936 = vmatpush.bf16.msra.mxu0 %v258
    %937 = vmatpush.bf16.msra.mxu0 %v256
    %938 = vmatpush.bf16.msra.mxu0 %v254
    %939 = vmatpush.bf16.msra.mxu0 %v252
    %940 = vmatmul.bf16.gmra.mxu0 %v930
    %v941 = vpop.f32.mrf.mxu0
    %v942 = vadd.f32 0.0, %v941
    %v943 = vpop.f32.mrf.mxu0
    %944 = vdwg.mxu0
    %945 = vmatpush.bf16.msra.mxu0 0
    %946 = vmatpush.bf16.msra.mxu0 0
    %947 = vmatpush.bf16.msra.mxu0 0
    %948 = vmatpush.bf16.msra.mxu0 0
    %949 = vmatpush.bf16.msra.mxu0 %v259
    %950 = vmatpush.bf16.msra.mxu0 %v257
    %951 = vmatpush.bf16.msra.mxu0 %v255
    %952 = vmatpush.bf16.msra.mxu0 %v253
    %953 = vmatmul.bf16.gmra.mxu0 %v930
    %v954 = vpop.f32.mrf.mxu0
    %v955 = vadd.f32 0.0, %v954
    %v956 = vpop.f32.mrf.mxu0
    %957 = vdwg.mxu0
    %v958 = vadd.f32 %v923, %v942
    %v959 = vadd.f32 %v924, %v955
    %v960 = vxor.u32 %v958, 2147483648
    %v961 = vmul.f32 %v960, 1.442695
    %v962 = vpow.pop %v961
    %v963 = vadd.f32 %v962, 1.0
    %v964 = vrcp.pop %v963
    %v965 = vmul.f32 %v963, %v964
    %v966 = vsub.f32 1.0, %v965
    %v967 = vmul.f32 %v964, %v966
    %v968 = vadd.f32 %v964, %v967
    %vm969 = vweird.f32 %v963
    %vm970 = vweird.f32 %v964
    %vm971 = vmor %vm969, %vm970
    %v972 = vsel %vm971, %v964, %v968
    %v973 = vand.u32 2147483647, %v963
    %vm974 = vcmp.eq.f32.partialorder %v973, 8.507059e+37
    %v975 = vand.u32 %v963, 2147483648
    %v976 = vor.u32 1.1754944e-38, %v975
    %v977 = vsel %vm974, %v976, %v972
    %v978 = vmul.f32 1.0, %v977
    %v979 = vtanh.pop %v959
    %v980 = vxor.u32 %v959, 2147483648
    %v981 = vmul.f32 %v980, 1.442695
    %v982 = vpow.pop %v981
    %v983 = vadd.f32 %v982, 1.0
    %v984 = vrcp.pop %v983
    %v985 = vmul.f32 %v983, %v984
    %v986 = vsub.f32 1.0, %v985
    %v987 = vmul.f32 %v984, %v986
    %v988 = vadd.f32 %v984, %v987
    %vm989 = vweird.f32 %v983
    %vm990 = vweird.f32 %v984
    %vm991 = vmor %vm989, %vm990
    %v992 = vsel %vm991, %v984, %v988
    %v993 = vand.u32 2147483647, %v983
    %vm994 = vcmp.eq.f32.partialorder %v993, 8.507059e+37
    %v995 = vand.u32 %v983, 2147483648
    %v996 = vor.u32 1.1754944e-38, %v995
    %v997 = vsel %vm994, %v996, %v992
    %v998 = vmul.f32 1.0, %v997
    %v999 = vmul.f32 %v978, %v840
    %v1000 = vmul.f32 %v978, %v979
    %1002 = vrot.lane.b32.xlu0 %v1000, 64
    %v1003 = vpop.permute.xlu0 %1002
    %v1005 = vadd.f32 %v999, %v1003
    %v1006 = vtanh.pop %v1005
    %v1007 = vmul.f32 %v998, %v1006
    %1009 = vrot.lane.b32.xlu0 %v842, 64
    %v1010 = vpop.permute.xlu0 %1009
    %v1012 = vsel %vm268, %v1010, %v922
    %v1013 = vpack.c.bf16 %v1012, %v1012
    %1014 = vmatpush.bf16.msra.mxu0 %v501
    %1015 = vmatpush.bf16.msra.mxu0 %v499
    %1016 = vmatpush.bf16.msra.mxu0 %v497
    %1017 = vmatpush.bf16.msra.mxu0 %v495
    %1018 = vmatpush.bf16.msra.mxu0 %v493
    %1019 = vmatpush.bf16.msra.mxu0 %v491
    %1020 = vmatpush.bf16.msra.mxu0 %v489
    %1021 = vmatpush.bf16.msra.mxu0 %v487
    %1022 = vmatmul.bf16.gmra.mxu0 %v1013
    %v1023 = vpop.f32.mrf.mxu0
    %v1024 = vadd.f32 %v222, %v1023
    %v1025 = vpop.f32.mrf.mxu0
    %1026 = vdwg.mxu0
    %1027 = vmatpush.bf16.msra.mxu0 %v502
    %1028 = vmatpush.bf16.msra.mxu0 %v500
    %1029 = vmatpush.bf16.msra.mxu0 %v498
    %1030 = vmatpush.bf16.msra.mxu0 %v496
    %1031 = vmatpush.bf16.msra.mxu0 %v494
    %1032 = vmatpush.bf16.msra.mxu0 %v492
    %1033 = vmatpush.bf16.msra.mxu0 %v490
    %1034 = vmatpush.bf16.msra.mxu0 %v488
    %1035 = vmatmul.bf16.gmra.mxu0 %v1013
    %v1036 = vpop.f32.mrf.mxu0
    %v1037 = vadd.f32 %v223, %v1036
    %v1038 = vpop.f32.mrf.mxu0
    %1039 = vdwg.mxu0
    %v1040 = vxor.u32 %v1024, 2147483648
    %v1041 = vmul.f32 %v1040, 1.442695
    %v1042 = vpow.pop %v1041
    %v1043 = vadd.f32 %v1042, 1.0
    %v1044 = vrcp.pop %v1043
    %v1045 = vmul.f32 %v1043, %v1044
    %v1046 = vsub.f32 1.0, %v1045
    %v1047 = vmul.f32 %v1044, %v1046
    %v1048 = vadd.f32 %v1044, %v1047
    %vm1049 = vweird.f32 %v1043
    %vm1050 = vweird.f32 %v1044
    %vm1051 = vmor %vm1049, %vm1050
    %v1052 = vsel %vm1051, %v1044, %v1048
    %v1053 = vand.u32 2147483647, %v1043
    %vm1054 = vcmp.eq.f32.partialorder %v1053, 8.507059e+37
    %v1055 = vand.u32 %v1043, 2147483648
    %v1056 = vor.u32 1.1754944e-38, %v1055
    %v1057 = vsel %vm1054, %v1056, %v1052
    %v1058 = vmul.f32 1.0, %v1057
    %v1059 = vtanh.pop %v1037
    %v1060 = vxor.u32 %v1037, 2147483648
    %v1061 = vmul.f32 %v1060, 1.442695
    %v1062 = vpow.pop %v1061
    %v1063 = vadd.f32 %v1062, 1.0
    %v1064 = vrcp.pop %v1063
    %v1065 = vmul.f32 %v1063, %v1064
    %v1066 = vsub.f32 1.0, %v1065
    %v1067 = vmul.f32 %v1064, %v1066
    %v1068 = vadd.f32 %v1064, %v1067
    %vm1069 = vweird.f32 %v1063
    %vm1070 = vweird.f32 %v1064
    %vm1071 = vmor %vm1069, %vm1070
    %v1072 = vsel %vm1071, %v1064, %v1068
    %v1073 = vand.u32 2147483647, %v1063
    %vm1074 = vcmp.eq.f32.partialorder %v1073, 8.507059e+37
    %v1075 = vand.u32 %v1063, 2147483648
    %v1076 = vor.u32 1.1754944e-38, %v1075
    %v1077 = vsel %vm1074, %v1076, %v1072
    %v1078 = vmul.f32 1.0, %v1077
    %v1079 = vmul.f32 %v1058, %v920
    %v1080 = vmul.f32 %v1058, %v1059
    %1082 = vrot.lane.b32.xlu0 %v1080, 64
    %v1083 = vpop.permute.xlu0 %1082
    %v1085 = vadd.f32 %v1079, %v1083
    %v1086 = vtanh.pop %v1085
    %v1087 = vmul.f32 %v1078, %v1086
    %v1088 = vld [vmem:[#allocation2 + $0x50] sm:$0xff]
    %v1089 = vld [vmem:[#allocation2 + $0x58] sm:$0xff]
    %v1090 = vpack.c.bf16 %v1007, %v1007
    %1092 = vrot.lane.b32.xlu0 %v1090, 64
    %v1093 = vpop.permute.xlu0 %1092
    %v1095 = vsel %vm268, %v1093, 0
    %1097 = vmatpush.bf16.msra.mxu0 0
    %1098 = vmatpush.bf16.msra.mxu0 0
    %1099 = vmatpush.bf16.msra.mxu0 0
    %1100 = vmatpush.bf16.msra.mxu0 0
    %1101 = vmatpush.bf16.msra.mxu0 %v258
    %1102 = vmatpush.bf16.msra.mxu0 %v256
    %1103 = vmatpush.bf16.msra.mxu0 %v254
    %1104 = vmatpush.bf16.msra.mxu0 %v252
    %1105 = vmatmul.bf16.gmra.mxu0 %v1095
    %v1106 = vpop.f32.mrf.mxu0
    %v1107 = vadd.f32 0.0, %v1106
    %v1108 = vpop.f32.mrf.mxu0
    %1109 = vdwg.mxu0
    %1110 = vmatpush.bf16.msra.mxu0 0
    %1111 = vmatpush.bf16.msra.mxu0 0
    %1112 = vmatpush.bf16.msra.mxu0 0
    %1113 = vmatpush.bf16.msra.mxu0 0
    %1114 = vmatpush.bf16.msra.mxu0 %v259
    %1115 = vmatpush.bf16.msra.mxu0 %v257
    %1116 = vmatpush.bf16.msra.mxu0 %v255
    %1117 = vmatpush.bf16.msra.mxu0 %v253
    %1118 = vmatmul.bf16.gmra.mxu0 %v1095
    %v1119 = vpop.f32.mrf.mxu0
    %v1120 = vadd.f32 0.0, %v1119
    %v1121 = vpop.f32.mrf.mxu0
    %1122 = vdwg.mxu0
    %v1123 = vadd.f32 %v1088, %v1107
    %v1124 = vadd.f32 %v1089, %v1120
    %v1125 = vxor.u32 %v1123, 2147483648
    %v1126 = vmul.f32 %v1125, 1.442695
    %v1127 = vpow.pop %v1126
    %v1128 = vadd.f32 %v1127, 1.0
    %v1129 = vrcp.pop %v1128
    %v1130 = vmul.f32 %v1128, %v1129
    %v1131 = vsub.f32 1.0, %v1130
    %v1132 = vmul.f32 %v1129, %v1131
    %v1133 = vadd.f32 %v1129, %v1132
    %vm1134 = vweird.f32 %v1128
    %vm1135 = vweird.f32 %v1129
    %vm1136 = vmor %vm1134, %vm1135
    %v1137 = vsel %vm1136, %v1129, %v1133
    %v1138 = vand.u32 2147483647, %v1128
    %vm1139 = vcmp.eq.f32.partialorder %v1138, 8.507059e+37
    %v1140 = vand.u32 %v1128, 2147483648
    %v1141 = vor.u32 1.1754944e-38, %v1140
    %v1142 = vsel %vm1139, %v1141, %v1137
    %v1143 = vmul.f32 1.0, %v1142
    %v1144 = vtanh.pop %v1124
    %v1145 = vxor.u32 %v1124, 2147483648
    %v1146 = vmul.f32 %v1145, 1.442695
    %v1147 = vpow.pop %v1146
    %v1148 = vadd.f32 %v1147, 1.0
    %v1149 = vrcp.pop %v1148
    %v1150 = vmul.f32 %v1148, %v1149
    %v1151 = vsub.f32 1.0, %v1150
    %v1152 = vmul.f32 %v1149, %v1151
    %v1153 = vadd.f32 %v1149, %v1152
    %vm1154 = vweird.f32 %v1148
    %vm1155 = vweird.f32 %v1149
    %vm1156 = vmor %vm1154, %vm1155
    %v1157 = vsel %vm1156, %v1149, %v1153
    %v1158 = vand.u32 2147483647, %v1148
    %vm1159 = vcmp.eq.f32.partialorder %v1158, 8.507059e+37
    %v1160 = vand.u32 %v1148, 2147483648
    %v1161 = vor.u32 1.1754944e-38, %v1160
    %v1162 = vsel %vm1159, %v1161, %v1157
    %v1163 = vmul.f32 1.0, %v1162
    %v1164 = vmul.f32 %v1143, %v1005
    %v1165 = vmul.f32 %v1143, %v1144
    %1167 = vrot.lane.b32.xlu0 %v1165, 64
    %v1168 = vpop.permute.xlu0 %1167
    %v1170 = vadd.f32 %v1164, %v1168
    %v1171 = vtanh.pop %v1170
    %v1172 = vmul.f32 %v1163, %v1171
    %1174 = vrot.lane.b32.xlu0 %v1007, 64
    %v1175 = vpop.permute.xlu0 %1174
    %v1177 = vsel %vm268, %v1175, %v1087
    %v1178 = vpack.c.bf16 %v1177, %v1177
    %1179 = vmatpush.bf16.msra.mxu0 %v501
    %1180 = vmatpush.bf16.msra.mxu0 %v499
    %1181 = vmatpush.bf16.msra.mxu0 %v497
    %1182 = vmatpush.bf16.msra.mxu0 %v495
    %1183 = vmatpush.bf16.msra.mxu0 %v493
    %1184 = vmatpush.bf16.msra.mxu0 %v491
    %1185 = vmatpush.bf16.msra.mxu0 %v489
    %1186 = vmatpush.bf16.msra.mxu0 %v487
    %1187 = vmatmul.bf16.gmra.mxu0 %v1178
    %v1188 = vpop.f32.mrf.mxu0
    %v1189 = vadd.f32 %v222, %v1188
    %v1190 = vpop.f32.mrf.mxu0
    %1191 = vdwg.mxu0
    %1192 = vmatpush.bf16.msra.mxu0 %v502
    %1193 = vmatpush.bf16.msra.mxu0 %v500
    %1194 = vmatpush.bf16.msra.mxu0 %v498
    %1195 = vmatpush.bf16.msra.mxu0 %v496
    %1196 = vmatpush.bf16.msra.mxu0 %v494
    %1197 = vmatpush.bf16.msra.mxu0 %v492
    %1198 = vmatpush.bf16.msra.mxu0 %v490
    %1199 = vmatpush.bf16.msra.mxu0 %v488
    %1200 = vmatmul.bf16.gmra.mxu0 %v1178
    %v1201 = vpop.f32.mrf.mxu0
    %v1202 = vadd.f32 %v223, %v1201
    %v1203 = vpop.f32.mrf.mxu0
    %1204 = vdwg.mxu0
    %v1205 = vxor.u32 %v1189, 2147483648
    %v1206 = vmul.f32 %v1205, 1.442695
    %v1207 = vpow.pop %v1206
    %v1208 = vadd.f32 %v1207, 1.0
    %v1209 = vrcp.pop %v1208
    %v1210 = vmul.f32 %v1208, %v1209
    %v1211 = vsub.f32 1.0, %v1210
    %v1212 = vmul.f32 %v1209, %v1211
    %v1213 = vadd.f32 %v1209, %v1212
    %vm1214 = vweird.f32 %v1208
    %vm1215 = vweird.f32 %v1209
    %vm1216 = vmor %vm1214, %vm1215
    %v1217 = vsel %vm1216, %v1209, %v1213
    %v1218 = vand.u32 2147483647, %v1208
    %vm1219 = vcmp.eq.f32.partialorder %v1218, 8.507059e+37
    %v1220 = vand.u32 %v1208, 2147483648
    %v1221 = vor.u32 1.1754944e-38, %v1220
    %v1222 = vsel %vm1219, %v1221, %v1217
    %v1223 = vmul.f32 1.0, %v1222
    %v1224 = vtanh.pop %v1202
    %v1225 = vxor.u32 %v1202, 2147483648
    %v1226 = vmul.f32 %v1225, 1.442695
    %v1227 = vpow.pop %v1226
    %v1228 = vadd.f32 %v1227, 1.0
    %v1229 = vrcp.pop %v1228
    %v1230 = vmul.f32 %v1228, %v1229
    %v1231 = vsub.f32 1.0, %v1230
    %v1232 = vmul.f32 %v1229, %v1231
    %v1233 = vadd.f32 %v1229, %v1232
    %vm1234 = vweird.f32 %v1228
    %vm1235 = vweird.f32 %v1229
    %vm1236 = vmor %vm1234, %vm1235
    %v1237 = vsel %vm1236, %v1229, %v1233
    %v1238 = vand.u32 2147483647, %v1228
    %vm1239 = vcmp.eq.f32.partialorder %v1238, 8.507059e+37
    %v1240 = vand.u32 %v1228, 2147483648
    %v1241 = vor.u32 1.1754944e-38, %v1240
    %v1242 = vsel %vm1239, %v1241, %v1237
    %v1243 = vmul.f32 1.0, %v1242
    %v1244 = vmul.f32 %v1223, %v1085
    %v1245 = vmul.f32 %v1223, %v1224
    %1247 = vrot.lane.b32.xlu0 %v1245, 64
    %v1248 = vpop.permute.xlu0 %1247
    %v1250 = vadd.f32 %v1244, %v1248
    %v1251 = vtanh.pop %v1250
    %v1252 = vmul.f32 %v1243, %v1251
    %v1253 = vld [vmem:[#allocation2 + $0x60] sm:$0xff]
    %v1254 = vld [vmem:[#allocation2 + $0x68] sm:$0xff]
    %v1255 = vpack.c.bf16 %v1172, %v1172
    %1257 = vrot.lane.b32.xlu0 %v1255, 64
    %v1258 = vpop.permute.xlu0 %1257
    %v1260 = vsel %vm268, %v1258, 0
    %1262 = vmatpush.bf16.msra.mxu0 0
    %1263 = vmatpush.bf16.msra.mxu0 0
    %1264 = vmatpush.bf16.msra.mxu0 0
    %1265 = vmatpush.bf16.msra.mxu0 0
    %1266 = vmatpush.bf16.msra.mxu0 %v258
    %1267 = vmatpush.bf16.msra.mxu0 %v256
    %1268 = vmatpush.bf16.msra.mxu0 %v254
    %1269 = vmatpush.bf16.msra.mxu0 %v252
    %1270 = vmatmul.bf16.gmra.mxu0 %v1260
    %v1271 = vpop.f32.mrf.mxu0
    %v1272 = vadd.f32 0.0, %v1271
    %v1273 = vpop.f32.mrf.mxu0
    %1274 = vdwg.mxu0
    %1275 = vmatpush.bf16.msra.mxu0 0
    %1276 = vmatpush.bf16.msra.mxu0 0
    %1277 = vmatpush.bf16.msra.mxu0 0
    %1278 = vmatpush.bf16.msra.mxu0 0
    %1279 = vmatpush.bf16.msra.mxu0 %v259
    %1280 = vmatpush.bf16.msra.mxu0 %v257
    %1281 = vmatpush.bf16.msra.mxu0 %v255
    %1282 = vmatpush.bf16.msra.mxu0 %v253
    %1283 = vmatmul.bf16.gmra.mxu0 %v1260
    %v1284 = vpop.f32.mrf.mxu0
    %v1285 = vadd.f32 0.0, %v1284
    %v1286 = vpop.f32.mrf.mxu0
    %1287 = vdwg.mxu0
    %v1288 = vadd.f32 %v1253, %v1272
    %v1289 = vadd.f32 %v1254, %v1285
    %v1290 = vxor.u32 %v1288, 2147483648
    %v1291 = vmul.f32 %v1290, 1.442695
    %v1292 = vpow.pop %v1291
    %v1293 = vadd.f32 %v1292, 1.0
    %v1294 = vrcp.pop %v1293
    %v1295 = vmul.f32 %v1293, %v1294
    %v1296 = vsub.f32 1.0, %v1295
    %v1297 = vmul.f32 %v1294, %v1296
    %v1298 = vadd.f32 %v1294, %v1297
    %vm1299 = vweird.f32 %v1293
    %vm1300 = vweird.f32 %v1294
    %vm1301 = vmor %vm1299, %vm1300
    %v1302 = vsel %vm1301, %v1294, %v1298
    %v1303 = vand.u32 2147483647, %v1293
    %vm1304 = vcmp.eq.f32.partialorder %v1303, 8.507059e+37
    %v1305 = vand.u32 %v1293, 2147483648
    %v1306 = vor.u32 1.1754944e-38, %v1305
    %v1307 = vsel %vm1304, %v1306, %v1302
    %v1308 = vmul.f32 1.0, %v1307
    %v1309 = vtanh.pop %v1289
    %v1310 = vxor.u32 %v1289, 2147483648
    %v1311 = vmul.f32 %v1310, 1.442695
    %v1312 = vpow.pop %v1311
    %v1313 = vadd.f32 %v1312, 1.0
    %v1314 = vrcp.pop %v1313
    %v1315 = vmul.f32 %v1313, %v1314
    %v1316 = vsub.f32 1.0, %v1315
    %v1317 = vmul.f32 %v1314, %v1316
    %v1318 = vadd.f32 %v1314, %v1317
    %vm1319 = vweird.f32 %v1313
    %vm1320 = vweird.f32 %v1314
    %vm1321 = vmor %vm1319, %vm1320
    %v1322 = vsel %vm1321, %v1314, %v1318
    %v1323 = vand.u32 2147483647, %v1313
    %vm1324 = vcmp.eq.f32.partialorder %v1323, 8.507059e+37
    %v1325 = vand.u32 %v1313, 2147483648
    %v1326 = vor.u32 1.1754944e-38, %v1325
    %v1327 = vsel %vm1324, %v1326, %v1322
    %v1328 = vmul.f32 1.0, %v1327
    %v1329 = vmul.f32 %v1308, %v1170
    %v1330 = vmul.f32 %v1308, %v1309
    %1332 = vrot.lane.b32.xlu0 %v1330, 64
    %v1333 = vpop.permute.xlu0 %1332
    %v1335 = vadd.f32 %v1329, %v1333
    %v1336 = vtanh.pop %v1335
    %v1337 = vmul.f32 %v1328, %v1336
    %1339 = vrot.lane.b32.xlu0 %v1172, 64
    %v1340 = vpop.permute.xlu0 %1339
    %v1342 = vsel %vm268, %v1340, %v1252
    %v1343 = vpack.c.bf16 %v1342, %v1342
    %1344 = vmatpush.bf16.msra.mxu0 %v501
    %1345 = vmatpush.bf16.msra.mxu0 %v499
    %1346 = vmatpush.bf16.msra.mxu0 %v497
    %1347 = vmatpush.bf16.msra.mxu0 %v495
    %1348 = vmatpush.bf16.msra.mxu0 %v493
    %1349 = vmatpush.bf16.msra.mxu0 %v491
    %1350 = vmatpush.bf16.msra.mxu0 %v489
    %1351 = vmatpush.bf16.msra.mxu0 %v487
    %1352 = vmatmul.bf16.gmra.mxu0 %v1343
    %v1353 = vpop.f32.mrf.mxu0
    %v1354 = vadd.f32 %v222, %v1353
    %v1355 = vpop.f32.mrf.mxu0
    %1356 = vdwg.mxu0
    %1357 = vmatpush.bf16.msra.mxu0 %v502
    %1358 = vmatpush.bf16.msra.mxu0 %v500
    %1359 = vmatpush.bf16.msra.mxu0 %v498
    %1360 = vmatpush.bf16.msra.mxu0 %v496
    %1361 = vmatpush.bf16.msra.mxu0 %v494
    %1362 = vmatpush.bf16.msra.mxu0 %v492
    %1363 = vmatpush.bf16.msra.mxu0 %v490
    %1364 = vmatpush.bf16.msra.mxu0 %v488
    %1365 = vmatmul.bf16.gmra.mxu0 %v1343
    %v1366 = vpop.f32.mrf.mxu0
    %v1367 = vadd.f32 %v223, %v1366
    %v1368 = vpop.f32.mrf.mxu0
    %1369 = vdwg.mxu0
    %v1370 = vxor.u32 %v1354, 2147483648
    %v1371 = vmul.f32 %v1370, 1.442695
    %v1372 = vpow.pop %v1371
    %v1373 = vadd.f32 %v1372, 1.0
    %v1374 = vrcp.pop %v1373
    %v1375 = vmul.f32 %v1373, %v1374
    %v1376 = vsub.f32 1.0, %v1375
    %v1377 = vmul.f32 %v1374, %v1376
    %v1378 = vadd.f32 %v1374, %v1377
    %vm1379 = vweird.f32 %v1373
    %vm1380 = vweird.f32 %v1374
    %vm1381 = vmor %vm1379, %vm1380
    %v1382 = vsel %vm1381, %v1374, %v1378
    %v1383 = vand.u32 2147483647, %v1373
    %vm1384 = vcmp.eq.f32.partialorder %v1383, 8.507059e+37
    %v1385 = vand.u32 %v1373, 2147483648
    %v1386 = vor.u32 1.1754944e-38, %v1385
    %v1387 = vsel %vm1384, %v1386, %v1382
    %v1388 = vmul.f32 1.0, %v1387
    %v1389 = vtanh.pop %v1367
    %v1390 = vxor.u32 %v1367, 2147483648
    %v1391 = vmul.f32 %v1390, 1.442695
    %v1392 = vpow.pop %v1391
    %v1393 = vadd.f32 %v1392, 1.0
    %v1394 = vrcp.pop %v1393
    %v1395 = vmul.f32 %v1393, %v1394
    %v1396 = vsub.f32 1.0, %v1395
    %v1397 = vmul.f32 %v1394, %v1396
    %v1398 = vadd.f32 %v1394, %v1397
    %vm1399 = vweird.f32 %v1393
    %vm1400 = vweird.f32 %v1394
    %vm1401 = vmor %vm1399, %vm1400
    %v1402 = vsel %vm1401, %v1394, %v1398
    %v1403 = vand.u32 2147483647, %v1393
    %vm1404 = vcmp.eq.f32.partialorder %v1403, 8.507059e+37
    %v1405 = vand.u32 %v1393, 2147483648
    %v1406 = vor.u32 1.1754944e-38, %v1405
    %v1407 = vsel %vm1404, %v1406, %v1402
    %v1408 = vmul.f32 1.0, %v1407
    %v1409 = vmul.f32 %v1388, %v1250
    %v1410 = vmul.f32 %v1388, %v1389
    %1412 = vrot.lane.b32.xlu0 %v1410, 64
    %v1413 = vpop.permute.xlu0 %1412
    %v1415 = vadd.f32 %v1409, %v1413
    %v1416 = vtanh.pop %v1415
    %v1417 = vmul.f32 %v1408, %v1416
    %v1418 = vld [vmem:[#allocation2 + $0x70] sm:$0xff]
    %v1419 = vld [vmem:[#allocation2 + $0x78] sm:$0xff]
    %v1420 = vpack.c.bf16 %v1337, %v1337
    %1422 = vrot.lane.b32.xlu0 %v1420, 64
    %v1423 = vpop.permute.xlu0 %1422
    %v1425 = vsel %vm268, %v1423, 0
    %1427 = vmatpush.bf16.msra.mxu0 0
    %1428 = vmatpush.bf16.msra.mxu0 0
    %1429 = vmatpush.bf16.msra.mxu0 0
    %1430 = vmatpush.bf16.msra.mxu0 0
    %1431 = vmatpush.bf16.msra.mxu0 %v258
    %1432 = vmatpush.bf16.msra.mxu0 %v256
    %1433 = vmatpush.bf16.msra.mxu0 %v254
    %1434 = vmatpush.bf16.msra.mxu0 %v252
    %1435 = vmatmul.bf16.gmra.mxu0 %v1425
    %v1436 = vpop.f32.mrf.mxu0
    %v1437 = vadd.f32 0.0, %v1436
    %v1438 = vpop.f32.mrf.mxu0
    %1439 = vdwg.mxu0
    %1440 = vmatpush.bf16.msra.mxu0 0
    %1441 = vmatpush.bf16.msra.mxu0 0
    %1442 = vmatpush.bf16.msra.mxu0 0
    %1443 = vmatpush.bf16.msra.mxu0 0
    %1444 = vmatpush.bf16.msra.mxu0 %v259
    %1445 = vmatpush.bf16.msra.mxu0 %v257
    %1446 = vmatpush.bf16.msra.mxu0 %v255
    %1447 = vmatpush.bf16.msra.mxu0 %v253
    %1448 = vmatmul.bf16.gmra.mxu0 %v1425
    %v1449 = vpop.f32.mrf.mxu0
    %v1450 = vadd.f32 0.0, %v1449
    %v1451 = vpop.f32.mrf.mxu0
    %1452 = vdwg.mxu0
    %v1453 = vadd.f32 %v1418, %v1437
    %v1454 = vadd.f32 %v1419, %v1450
    %v1455 = vxor.u32 %v1453, 2147483648
    %v1456 = vmul.f32 %v1455, 1.442695
    %v1457 = vpow.pop %v1456
    %v1458 = vadd.f32 %v1457, 1.0
    %v1459 = vrcp.pop %v1458
    %v1460 = vmul.f32 %v1458, %v1459
    %v1461 = vsub.f32 1.0, %v1460
    %v1462 = vmul.f32 %v1459, %v1461
    %v1463 = vadd.f32 %v1459, %v1462
    %vm1464 = vweird.f32 %v1458
    %vm1465 = vweird.f32 %v1459
    %vm1466 = vmor %vm1464, %vm1465
    %v1467 = vsel %vm1466, %v1459, %v1463
    %v1468 = vand.u32 2147483647, %v1458
    %vm1469 = vcmp.eq.f32.partialorder %v1468, 8.507059e+37
    %v1470 = vand.u32 %v1458, 2147483648
    %v1471 = vor.u32 1.1754944e-38, %v1470
    %v1472 = vsel %vm1469, %v1471, %v1467
    %v1473 = vmul.f32 1.0, %v1472
    %v1474 = vtanh.pop %v1454
    %v1475 = vxor.u32 %v1454, 2147483648
    %v1476 = vmul.f32 %v1475, 1.442695
    %v1477 = vpow.pop %v1476
    %v1478 = vadd.f32 %v1477, 1.0
    %v1479 = vrcp.pop %v1478
    %v1480 = vmul.f32 %v1478, %v1479
    %v1481 = vsub.f32 1.0, %v1480
    %v1482 = vmul.f32 %v1479, %v1481
    %v1483 = vadd.f32 %v1479, %v1482
    %vm1484 = vweird.f32 %v1478
    %vm1485 = vweird.f32 %v1479
    %vm1486 = vmor %vm1484, %vm1485
    %v1487 = vsel %vm1486, %v1479, %v1483
    %v1488 = vand.u32 2147483647, %v1478
    %vm1489 = vcmp.eq.f32.partialorder %v1488, 8.507059e+37
    %v1490 = vand.u32 %v1478, 2147483648
    %v1491 = vor.u32 1.1754944e-38, %v1490
    %v1492 = vsel %vm1489, %v1491, %v1487
    %v1493 = vmul.f32 1.0, %v1492
    %v1494 = vmul.f32 %v1473, %v1335
    %v1495 = vmul.f32 %v1473, %v1474
    %1497 = vrot.lane.b32.xlu0 %v1495, 64
    %v1498 = vpop.permute.xlu0 %1497
    %v1500 = vadd.f32 %v1494, %v1498
    %v1501 = vtanh.pop %v1500
    %v1502 = vmul.f32 %v1493, %v1501
    %1504 = vrot.lane.b32.xlu0 %v1337, 64
    %v1505 = vpop.permute.xlu0 %1504
    %v1507 = vsel %vm268, %v1505, %v1417
    %v1508 = vpack.c.bf16 %v1507, %v1507
    %1509 = vmatpush.bf16.msra.mxu0 %v501
    %1510 = vmatpush.bf16.msra.mxu0 %v499
    %1511 = vmatpush.bf16.msra.mxu0 %v497
    %1512 = vmatpush.bf16.msra.mxu0 %v495
    %1513 = vmatpush.bf16.msra.mxu0 %v493
    %1514 = vmatpush.bf16.msra.mxu0 %v491
    %1515 = vmatpush.bf16.msra.mxu0 %v489
    %1516 = vmatpush.bf16.msra.mxu0 %v487
    %1517 = vmatmul.bf16.gmra.mxu0 %v1508
    %v1518 = vpop.f32.mrf.mxu0
    %v1519 = vadd.f32 %v222, %v1518
    %v1520 = vpop.f32.mrf.mxu0
    %1521 = vdwg.mxu0
    %1522 = vmatpush.bf16.msra.mxu0 %v502
    %1523 = vmatpush.bf16.msra.mxu0 %v500
    %1524 = vmatpush.bf16.msra.mxu0 %v498
    %1525 = vmatpush.bf16.msra.mxu0 %v496
    %1526 = vmatpush.bf16.msra.mxu0 %v494
    %1527 = vmatpush.bf16.msra.mxu0 %v492
    %1528 = vmatpush.bf16.msra.mxu0 %v490
    %1529 = vmatpush.bf16.msra.mxu0 %v488
    %1530 = vmatmul.bf16.gmra.mxu0 %v1508
    %v1531 = vpop.f32.mrf.mxu0
    %v1532 = vadd.f32 %v223, %v1531
    %v1533 = vpop.f32.mrf.mxu0
    %1534 = vdwg.mxu0
    %v1535 = vxor.u32 %v1519, 2147483648
    %v1536 = vmul.f32 %v1535, 1.442695
    %v1537 = vpow.pop %v1536
    %v1538 = vadd.f32 %v1537, 1.0
    %v1539 = vrcp.pop %v1538
    %v1540 = vmul.f32 %v1538, %v1539
    %v1541 = vsub.f32 1.0, %v1540
    %v1542 = vmul.f32 %v1539, %v1541
    %v1543 = vadd.f32 %v1539, %v1542
    %vm1544 = vweird.f32 %v1538
    %vm1545 = vweird.f32 %v1539
    %vm1546 = vmor %vm1544, %vm1545
    %v1547 = vsel %vm1546, %v1539, %v1543
    %v1548 = vand.u32 2147483647, %v1538
    %vm1549 = vcmp.eq.f32.partialorder %v1548, 8.507059e+37
    %v1550 = vand.u32 %v1538, 2147483648
    %v1551 = vor.u32 1.1754944e-38, %v1550
    %v1552 = vsel %vm1549, %v1551, %v1547
    %v1553 = vmul.f32 1.0, %v1552
    %v1554 = vtanh.pop %v1532
    %v1555 = vxor.u32 %v1532, 2147483648
    %v1556 = vmul.f32 %v1555, 1.442695
    %v1557 = vpow.pop %v1556
    %v1558 = vadd.f32 %v1557, 1.0
    %v1559 = vrcp.pop %v1558
    %v1560 = vmul.f32 %v1558, %v1559
    %v1561 = vsub.f32 1.0, %v1560
    %v1562 = vmul.f32 %v1559, %v1561
    %v1563 = vadd.f32 %v1559, %v1562
    %vm1564 = vweird.f32 %v1558
    %vm1565 = vweird.f32 %v1559
    %vm1566 = vmor %vm1564, %vm1565
    %v1567 = vsel %vm1566, %v1559, %v1563
    %v1568 = vand.u32 2147483647, %v1558
    %vm1569 = vcmp.eq.f32.partialorder %v1568, 8.507059e+37
    %v1570 = vand.u32 %v1558, 2147483648
    %v1571 = vor.u32 1.1754944e-38, %v1570
    %v1572 = vsel %vm1569, %v1571, %v1567
    %v1573 = vmul.f32 1.0, %v1572
    %v1574 = vmul.f32 %v1553, %v1415
    %v1575 = vmul.f32 %v1553, %v1554
    %1577 = vrot.lane.b32.xlu0 %v1575, 64
    %v1578 = vpop.permute.xlu0 %1577
    %v1580 = vadd.f32 %v1574, %v1578
    %v1581 = vtanh.pop %v1580
    %v1582 = vmul.f32 %v1573, %v1581
    %1584 = vrot.lane.b32.xlu0 %v1502, 64
    %v1585 = vpop.permute.xlu0 %1584
    %v1587 = vsel %vm268, %v1585, %v1582
    %v1588 = vpack.c.bf16 %v1587, %v1587
    %1589 = vmatpush.bf16.msra.mxu0 %v501
    %1590 = vmatpush.bf16.msra.mxu0 %v499
    %1591 = vmatpush.bf16.msra.mxu0 %v497
    %1592 = vmatpush.bf16.msra.mxu0 %v495
    %1593 = vmatpush.bf16.msra.mxu0 %v493
    %1594 = vmatpush.bf16.msra.mxu0 %v491
    %1595 = vmatpush.bf16.msra.mxu0 %v489
    %1596 = vmatpush.bf16.msra.mxu0 %v487
    %1597 = vmatmul.bf16.gmra.mxu0 %v1588
    %v1598 = vpop.f32.mrf.mxu0
    %v1599 = vadd.f32 %v222, %v1598
    %v1600 = vpop.f32.mrf.mxu0
    %1601 = vdwg.mxu0
    %1602 = vmatpush.bf16.msra.mxu0 %v502
    %1603 = vmatpush.bf16.msra.mxu0 %v500
    %1604 = vmatpush.bf16.msra.mxu0 %v498
    %1605 = vmatpush.bf16.msra.mxu0 %v496
    %1606 = vmatpush.bf16.msra.mxu0 %v494
    %1607 = vmatpush.bf16.msra.mxu0 %v492
    %1608 = vmatpush.bf16.msra.mxu0 %v490
    %1609 = vmatpush.bf16.msra.mxu0 %v488
    %1610 = vmatmul.bf16.gmra.mxu0 %v1588
    %v1611 = vpop.f32.mrf.mxu0
    %v1612 = vadd.f32 %v223, %v1611
    %v1613 = vpop.f32.mrf.mxu0
    %1614 = vdwg.mxu0
    %v1615 = vxor.u32 %v1599, 2147483648
    %v1616 = vmul.f32 %v1615, 1.442695
    %v1617 = vpow.pop %v1616
    %v1618 = vadd.f32 %v1617, 1.0
    %v1619 = vrcp.pop %v1618
    %v1620 = vmul.f32 %v1618, %v1619
    %v1621 = vsub.f32 1.0, %v1620
    %v1622 = vmul.f32 %v1619, %v1621
    %v1623 = vadd.f32 %v1619, %v1622
    %vm1624 = vweird.f32 %v1618
    %vm1625 = vweird.f32 %v1619
    %vm1626 = vmor %vm1624, %vm1625
    %v1627 = vsel %vm1626, %v1619, %v1623
    %v1628 = vand.u32 2147483647, %v1618
    %vm1629 = vcmp.eq.f32.partialorder %v1628, 8.507059e+37
    %v1630 = vand.u32 %v1618, 2147483648
    %v1631 = vor.u32 1.1754944e-38, %v1630
    %v1632 = vsel %vm1629, %v1631, %v1627
    %v1633 = vmul.f32 1.0, %v1632
    %v1634 = vtanh.pop %v1612
    %v1635 = vxor.u32 %v1612, 2147483648
    %v1636 = vmul.f32 %v1635, 1.442695
    %v1637 = vpow.pop %v1636
    %v1638 = vadd.f32 %v1637, 1.0
    %v1639 = vrcp.pop %v1638
    %v1640 = vmul.f32 %v1638, %v1639
    %v1641 = vsub.f32 1.0, %v1640
    %v1642 = vmul.f32 %v1639, %v1641
    %v1643 = vadd.f32 %v1639, %v1642
    %vm1644 = vweird.f32 %v1638
    %vm1645 = vweird.f32 %v1639
    %vm1646 = vmor %vm1644, %vm1645
    %v1647 = vsel %vm1646, %v1639, %v1643
    %v1648 = vand.u32 2147483647, %v1638
    %vm1649 = vcmp.eq.f32.partialorder %v1648, 8.507059e+37
    %v1650 = vand.u32 %v1638, 2147483648
    %v1651 = vor.u32 1.1754944e-38, %v1650
    %v1652 = vsel %vm1649, %v1651, %v1647
    %v1653 = vmul.f32 1.0, %v1652
    %v1654 = vmul.f32 %v1633, %v1580
    %v1655 = vmul.f32 %v1633, %v1634
    %1657 = vrot.lane.b32.xlu0 %v1655, 64
    %v1658 = vpop.permute.xlu0 %1657
    %v1660 = vadd.f32 %v1654, %v1658
    %v1661 = vtanh.pop %v1660
    %v1662 = vmul.f32 %v1653, %v1661
    %v1663 = vpack.c.bf16 %v1662, %v1662
    %v1664 = vld [vmem:[#allocation5] sm:$0xf]
    %v1665 = vld [vmem:[#allocation5 + $0x4] sm:$0xf]
    %v1666 = vld [vmem:[#allocation5 + $0x8] sm:$0xf]
    %v1667 = vld [vmem:[#allocation5 + $0xc] sm:$0xf]
    %v1668 = vld [vmem:[#allocation5 + $0x10] sm:$0xf]
    %v1669 = vld [vmem:[#allocation5 + $0x14] sm:$0xf]
    %v1670 = vld [vmem:[#allocation5 + $0x18] sm:$0xf]
    %v1671 = vld [vmem:[#allocation5 + $0x1c] sm:$0xf]
    %v1672 = vld [vmem:[%s7] sm:$0x1]
    %v1674 = vperm.slane %v1672, 0
    %1677 = vrot.lane.b32.xlu0 %v1663, 64
    %v1678 = vpop.permute.xlu0 %1677
    %v1687 = vunpack.c.l.b16 %v1664
    %v1688 = vunpack.c.l.b16 %v1665
    %v1689 = vunpack.c.l.b16 %v1666
    %v1690 = vunpack.c.l.b16 %v1667
    %v1691 = vunpack.c.l.b16 %v1668
    %v1692 = vunpack.c.l.b16 %v1669
    %v1693 = vunpack.c.l.b16 %v1670
    %v1694 = vunpack.c.l.b16 %v1671
    %v1695 = vpack.c.b16 %v1688, %v1687
    %v1696 = vpack.c.b16 %v1690, %v1689
    %v1697 = vpack.c.b16 %v1692, %v1691
    %v1698 = vpack.c.b16 %v1694, %v1693
    %v1704 = vsel %vm268, %v1678, 0
    %1706 = vmatpush.bf16.msra.mxu0 0
    %1707 = vmatpush.bf16.msra.mxu0 0
    %1708 = vmatpush.bf16.msra.mxu0 0
    %1709 = vmatpush.bf16.msra.mxu0 0
    %1710 = vmatpush.bf16.msra.mxu0 %v1698
    %1711 = vmatpush.bf16.msra.mxu0 %v1697
    %1712 = vmatpush.bf16.msra.mxu0 %v1696
    %1713 = vmatpush.bf16.msra.mxu0 %v1695
    %1714 = vmatmul.bf16.gmra.mxu0 %v1704
    %v1715 = vpop.f32.mrf.mxu0
    %v1716 = vadd.f32 %v1674, %v1715
    %v1717 = vpop.f32.mrf.mxu0
    %1718 = vdwg.mxu0
    %1719 = vst [vmem:[%s8] sm:$0xff] %v1716
    // Predicated region
    $region42: #{rnn_forward.1} parent=1 // pred_check
      _
    $region43: #{rnn_forward.1} parent=1 // pred_check_branch
      %1721 = sbr.rel (0) target = $region45
    $region44: #{rnn_forward.1} parent=1 // pred_region
      _
    $region45: #{rnn_forward.1} parent=1 // pred_fallthru
      _
    // Predicated region
    $region46: #{rnn_forward.1} parent=1 // pred_check
      _
    $region47: #{rnn_forward.1} parent=1 // pred_check_branch
      %1723 = sbr.rel (0) target = $region49
    $region48: #{rnn_forward.1} parent=1 // pred_region
      _
    $region49: #{rnn_forward.1} parent=1 // pred_fallthru
      _
    %1724 = vsyncpa [#allocation4], 1
    %1725 = vsyncpa [#allocation6], 1

</llo_original>
